<compile_context>
chip_gen: v7x
topology: tpu7x:2x2x1
jax: 0.10.0
libtpu: 0.0.40
codegen_flags: <defaults>
</compile_context>

<pallas_src>
import functools
import math

import numpy as np

import jax
import jax.numpy as jnp
from jax.experimental import pallas as pl
from jax.experimental.pallas import tpu as pltpu

# ---------------------------------------------------------------------------
# Synthetic irreps configuration (mirrors FasterTensorProduct.__init__):
#   in_irreps  = "4x0e + 4x1o + 4x1e + 4x0o"  -> in  feature dim 32
#   sh_irreps  = "1x0e + 1x1o"                -> sh  dim 4
#   out_irreps = "4x0e + 4x1o + 4x1e + 4x0o"  -> out feature dim 32
# ---------------------------------------------------------------------------
IN_MULS = {"0e": 4, "1o": 4, "1e": 4, "0o": 4}
OUT_MULS = {"0e": 4, "1o": 4, "1e": 4, "0o": 4}

WEIGHT_SHAPES = {
    "0e": (IN_MULS["0e"] + IN_MULS["1o"], OUT_MULS["0e"]),
    "1o": (IN_MULS["0e"] + IN_MULS["1o"] + IN_MULS["1e"], OUT_MULS["1o"]),
    "1e": (IN_MULS["1o"] + IN_MULS["1e"] + IN_MULS["0o"], OUT_MULS["1e"]),
    "0o": (IN_MULS["1e"] + IN_MULS["0o"], OUT_MULS["0o"]),
}
WEIGHT_NUMEL = sum(a * b for a, b in WEIGHT_SHAPES.values())

IN_DIM = IN_MULS["0e"] + 3 * IN_MULS["1o"] + 3 * IN_MULS["1e"] + IN_MULS["0o"]
OUT_DIM = OUT_MULS["0e"] + 3 * OUT_MULS["1o"] + 3 * OUT_MULS["1e"] + OUT_MULS["0o"]
SH_DIM = 4
MUL = 4                      # every irrep multiplicity in this config is 4

INV_SQRT3 = 1.0 / math.sqrt(3.0)
INV_SQRT2 = 1.0 / math.sqrt(2.0)


# ---------------------------------------------------------------------------
# Static layout bookkeeping: "grouped" (component-major) feature order used on
# the sublane axis inside the kernel, vs the module's interleaved (mul, 3)
# column order.  perm[grouped_row] = interleaved_column.
# ---------------------------------------------------------------------------
def _grouped_perm(muls):
    perm, base = [], 0
    for key in ("0e", "1o", "1e", "0o"):
        m = muls[key]
        if key in ("0e", "0o"):
            perm.extend(range(base, base + m))
            base += m
        else:  # l=1: interleaved col = base + 3*mm + c  ->  grouped row order (c, mm)
            for c in range(3):
                for mm in range(m):
                    perm.append(base + 3 * mm + c)
            base += 3 * m
    return np.asarray(perm, dtype=np.int32)


IN_PERM = _grouped_perm(IN_MULS)
OUT_PERM = _grouped_perm(OUT_MULS)
OUT_INV_PERM = np.argsort(OUT_PERM).astype(np.int32)

# grouped-layout row offsets of the four input irrep blocks
_R0E = 0
_R1O = _R0E + IN_MULS["0e"]
_R1E = _R1O + 3 * IN_MULS["1o"]
_R0O = _R1E + 3 * IN_MULS["1e"]

# grouped-layout row offsets of the four output irrep blocks
_O0E = 0
_O1O = _O0E + OUT_MULS["0e"]
_O1E = _O1O + 3 * OUT_MULS["1o"]
_O0O = _O1E + 3 * OUT_MULS["1e"]

# weight row offsets (feature-major flat weight: row = block_off + k*O + o)
_W0E = 0
_W1O = _W0E + WEIGHT_SHAPES["0e"][0] * WEIGHT_SHAPES["0e"][1]
_W1E = _W1O + WEIGHT_SHAPES["1o"][0] * WEIGHT_SHAPES["1o"][1]
_W0O = _W1E + WEIGHT_SHAPES["1e"][0] * WEIGHT_SHAPES["1e"][1]

# 1/sqrt(fan_in) normalization, applied to OUTPUTS (not the big weight tiles)
_S0E = 1.0 / math.sqrt(WEIGHT_SHAPES["0e"][0])
_S1O = 1.0 / math.sqrt(WEIGHT_SHAPES["1o"][0])
_S1E = 1.0 / math.sqrt(WEIGHT_SHAPES["1e"][0])
_S0O = 1.0 / math.sqrt(WEIGHT_SHAPES["0o"][0])


# ---------------------------------------------------------------------------
# Pallas kernel: one tile of TB edges, edges on the 128-wide lane axis.
#   x_ref : (IN_DIM,        TB)  component-major input features
#   sh_ref: (SH_DIM,        TB)  rows [sh0, sh1x, sh1y, sh1z]
#   w_ref : (WEIGHT_NUMEL,  TB)  rows = flat (block, k, o) per-edge weights
#   o_ref : (OUT_DIM,       TB)  component-major output features
# Everything is lane-dense VPU elementwise work; MXU is (correctly) unused
# because the weights are per-edge (batched 8/12 x 4 matvec).
# ---------------------------------------------------------------------------
def ftp_kernel(x_ref, sh_ref, w_ref, o_ref):
    f32 = jnp.float32
    tb = x_ref.shape[1]
    m = MUL

    # --- hoisted sh rows, broadcast once to the common multiplicity height ---
    sh0 = jnp.broadcast_to(sh_ref[0:1, :].astype(f32), (m, tb))
    sh1 = [jnp.broadcast_to(sh_ref[1 + c:2 + c, :].astype(f32), (m, tb))
           for c in range(3)]

    # --- input irrep blocks (each (MUL, TB), lane-dense), upcast once ---
    x0e = x_ref[_R0E:_R0E + m, :].astype(f32)
    x1o = [x_ref[_R1O + m * c:_R1O + m * (c + 1), :].astype(f32) for c in range(3)]
    x1e = [x_ref[_R1E + m * c:_R1E + m * (c + 1), :].astype(f32) for c in range(3)]
    x0o = x_ref[_R0O:_R0O + m, :].astype(f32)

    def wk(base, kout, k):
        # all O=4 output rows of channel k: (4, TB)
        return w_ref[base + k * kout:base + (k + 1) * kout, :].astype(f32)

    def cross_c(a, b, c):
        # component c of cross(a, b); a, b: 3 x (MUL, TB)
        i, j = (c + 1) % 3, (c + 2) % 3
        return a[i] * b[j] - a[j] * b[i]

    def contract_store(row, scale, chunk_fns, wbase, kin, kout):
        # K x O contraction unrolled over K as accumulated VPU FMAs.
        # Each chunk is built (thunk) right before its channels are consumed
        # and the finished block is stored immediately -> bounded live ranges.
        acc, k = None, 0
        for fn in chunk_fns:
            ch = fn()
            for r in range(ch.shape[0]):
                term = ch[r:r + 1, :] * wk(wbase, kout, k)     # (1,TB) bcast * (O,TB)
                acc = term if acc is None else acc + term
                k += 1
        assert k == kin
        o_ref[row:row + kout, :] = (acc * scale).astype(o_ref.dtype)

    # ---- 0e output block (K = 8) ----
    contract_store(
        _O0E, _S0E,
        [lambda: x0e * sh0,
         lambda: (x1o[0] * sh1[0] + x1o[1] * sh1[1] + x1o[2] * sh1[2]) * INV_SQRT3],
        _W0E, *WEIGHT_SHAPES["0e"])

    # ---- 1o output blocks, per component c (K = 12) ----
    for c in range(3):
        contract_store(
            _O1O + m * c, _S1O,
            [lambda c=c: x0e * sh1[c],
             lambda c=c: x1o[c] * sh0,
             lambda c=c: cross_c(x1e, sh1, c) * INV_SQRT2],
            _W1O, *WEIGHT_SHAPES["1o"])

    # ---- 1e output blocks, per component c (K = 12) ----
    for c in range(3):
        contract_store(
            _O1E + m * c, _S1E,
            [lambda c=c: cross_c(x1o, sh1, c) * INV_SQRT2,
             lambda c=c: x1e[c] * sh0,
             lambda c=c: x0o * sh1[c]],
            _W1E, *WEIGHT_SHAPES["1e"])

    # ---- 0o output block (K = 8) ----
    contract_store(
        _O0O, _S0O,
        [lambda: (x1e[0] * sh1[0] + x1e[1] * sh1[1] + x1e[2] * sh1[2]) * INV_SQRT3,
         lambda: x0o * sh0],
        _W0O, *WEIGHT_SHAPES["0o"])


# ---------------------------------------------------------------------------
# Wrapper.
#   in_    : (N, IN_DIM)
#   sh     : (N, SH_DIM)
#   weight : (N, WEIGHT_NUMEL)                 (module layout), or
#            (WEIGHT_NUMEL, N) with weight_transposed=True   (preferred:
#            the producer emits this for free and the dominant HBM stream is
#            then read exactly once — no wrapper pad+transpose pass).
# Inputs may be bf16 or f32; accumulation is always f32 in-kernel.
# ---------------------------------------------------------------------------
def _round_up(a, b):
    return (a + b - 1) // b * b


@functools.partial(jax.jit, static_argnames=("block_n", "weight_transposed"))
def faster_tensor_product(in_, sh, weight, *, block_n=2048, weight_transposed=False):
    N = in_.shape[0]
    out_dtype = jnp.result_type(in_.dtype, sh.dtype, weight.dtype)
    if not jnp.issubdtype(out_dtype, jnp.floating):
        out_dtype = jnp.float32

    # --- edge-tile selection (lane axis = edges) ---
    u = (N + 127) // 128                      # problem size in 128-lane units
    cap = max(1, u // 2)                      # keep >=2 grid steps (v7x: 2 TCs)
    tb = 128 * max(1, min(max(1, block_n // 128), cap))
    n_pad = _round_up(N, tb)
    pad = n_pad - N

    # --- layout plumbing: edges-on-lanes, component-major features on sublanes.
    # pad + transpose (+ static row gather) compose into one fused XLA copy per
    # tensor; in_/sh are small (~30% of the weight bytes).
    def to_feature_major(a, perm=None):
        a = jnp.pad(a, ((0, pad), (0, 0))) if pad else a
        a = jnp.transpose(a)
        return a if perm is None else a[perm]

    x_t = to_feature_major(in_, IN_PERM)              # (IN_DIM, n_pad)
    sh_t = to_feature_major(sh)                       # (SH_DIM, n_pad)
    if weight_transposed:
        # already (WEIGHT_NUMEL, N): only lane-padding, no transpose pass.
        w_t = jnp.pad(weight, ((0, 0), (0, pad))) if pad else weight
    else:
        w_t = to_feature_major(weight)                # (WEIGHT_NUMEL, n_pad)

    out_t = pl.pallas_call(
        ftp_kernel,
        out_shape=jax.ShapeDtypeStruct((OUT_DIM, n_pad), out_dtype),
        grid_spec=pltpu.PrefetchScalarGridSpec(
            num_scalar_prefetch=0,
            grid=(n_pad // tb,),
            in_specs=[
                pl.BlockSpec((IN_DIM, tb), lambda i: (0, i)),
                pl.BlockSpec((SH_DIM, tb), lambda i: (0, i)),
                pl.BlockSpec((WEIGHT_NUMEL, tb), lambda i: (0, i)),
            ],
            out_specs=pl.BlockSpec((OUT_DIM, tb), lambda i: (0, i)),
        ),
        compiler_params=pltpu.CompilerParams(
            dimension_semantics=("parallel",)),
    )(x_t, sh_t, w_t)

    # back to the module's (N, OUT_DIM) interleaved layout; this transpose +
    # inverse perm typically fuses with the downstream consumer.
    out = jnp.transpose(out_t[:, :N])
    return out[:, OUT_INV_PERM]


# ---------------------------------------------------------------------------
# Pure-JAX reference mirroring the PyTorch forward (for correctness check)
# ---------------------------------------------------------------------------
def reference_forward(in_, sh, weight):
    N = in_.shape[0]
    m0e, m1o, m1e, m0o = (IN_MULS[k] for k in ("0e", "1o", "1e", "0o"))
    s = 0
    x0e = in_[..., s:s + m0e]; s += m0e
    x1o = in_[..., s:s + 3 * m1o].reshape(N, m1o, 3); s += 3 * m1o
    x1e = in_[..., s:s + 3 * m1e].reshape(N, m1e, 3); s += 3 * m1e
    x0o = in_[..., s:s + m0o]; s += m0o
    sh0, sh1 = sh[..., 0], sh[..., 1:]

    out = {"0e": [], "1o": [], "1e": [], "0o": []}
    out["0e"].append(x0e * sh0[..., None])
    out["1o"].append(x0e[..., None] * sh1[..., None, :])
    out["0e"].append((x1o * sh1[..., None, :]).sum(-1) / math.sqrt(3))
    out["1o"].append(x1o * sh0[..., None, None])
    out["1e"].append(jnp.cross(x1o, sh1[..., None, :]) / math.sqrt(2))
    out["1o"].append(jnp.cross(x1e, sh1[..., None, :]) / math.sqrt(2))
    out["1e"].append(x1e * sh0[..., None, None])
    out["0o"].append((x1e * sh1[..., None, :]).sum(-1) / math.sqrt(3))
    out["1e"].append(x0o[..., None] * sh1[..., None, :])
    out["0o"].append(x0o * sh0[..., None])

    wdict, start = {}, 0
    for key, (kin, kout) in WEIGHT_SHAPES.items():
        wdict[key] = weight[..., start:start + kin * kout].reshape(
            N, kin, kout) / math.sqrt(kin)
        start += kin * kout

    o0e = jnp.einsum("nk,nko->no", jnp.concatenate(out["0e"], -1), wdict["0e"])
    o1o = jnp.einsum("nkc,nko->noc",
                     jnp.concatenate(out["1o"], -2), wdict["1o"]).reshape(N, -1)
    o1e = jnp.einsum("nkc,nko->noc",
                     jnp.concatenate(out["1e"], -2), wdict["1e"]).reshape(N, -1)
    o0o = jnp.einsum("nk,nko->no", jnp.concatenate(out["0o"], -1), wdict["0o"])
    return jnp.concatenate([o0e, o1o, o1e, o0o], axis=-1)


if __name__ == "__main__":
    key = jax.random.PRNGKey(0)
    k1, k2, k3 = jax.random.split(key, 3)

    # small but deliberately NOT a multiple of 128 -> exercises padding and a
    # multi-step "parallel" grid (tb is capped to keep >=2 steps).
    N = 300
    in_ = jax.random.normal(k1, (N, IN_DIM), dtype=jnp.float32)
    sh = jax.random.normal(k2, (N, SH_DIM), dtype=jnp.float32)
    weight = jax.random.normal(k3, (N, WEIGHT_NUMEL), dtype=jnp.float32)

    ref = reference_forward(in_, sh, weight)

    # 1) standard module layout (edge-major weight)
    out = jax.block_until_ready(faster_tensor_product(in_, sh, weight))
    assert out.shape == (N, OUT_DIM)
    err = float(jnp.max(jnp.abs(out - ref)))
    assert jnp.allclose(out, ref, atol=1e-4, rtol=1e-4), err

    # 2) preferred producer layout: weight already feature-major (W, N),
    #    so the dominant HBM stream skips the wrapper transpose entirely.
    out_t = jax.block_until_ready(
        faster_tensor_product(in_, sh, weight.T, weight_transposed=True))
    err_t = float(jnp.max(jnp.abs(out_t - ref)))
    assert jnp.allclose(out_t, ref, atol=1e-4, rtol=1e-4), err_t

    print("KERNEL_OK")
</pallas_src>

<mosaic_0001>
module attributes {stable_mosaic.version = 11 : i64} {
  func.func @ftp_kernel(%arg0: i32, %arg1: memref<32x128xf32, #tpu.memory_space<vmem>>, %arg2: memref<4x128xf32, #tpu.memory_space<vmem>>, %arg3: memref<160x128xf32, #tpu.memory_space<vmem>>, %arg4: memref<32x128xf32, #tpu.memory_space<vmem>>) attributes {dimension_semantics = [#tpu.dimension_semantics<parallel>], iteration_bounds = array<i64: 3>, scalar_prefetch = 0 : i64, scratch_operands = 0 : i64, tpu.core_type = #tpu.core_type<tc>, window_params = [{transform_indices = @transform_0, window_bounds = array<i64: 32, 128>}, {transform_indices = @transform_1, window_bounds = array<i64: 4, 128>}, {transform_indices = @transform_2, window_bounds = array<i64: 160, 128>}, {transform_indices = @transform_3, window_bounds = array<i64: 32, 128>}]} {
    %c0 = arith.constant 0 : index
    %c0_0 = arith.constant 0 : index
    %0 = vector.load %arg2[%c0, %c0_0] : memref<4x128xf32, #tpu.memory_space<vmem>>, vector<1x128xf32>
    %1 = vector.shape_cast %0 : vector<1x128xf32> to vector<1x128xf32>
    %2 = vector.broadcast %1 : vector<1x128xf32> to vector<4x128xf32>
    %c1 = arith.constant 1 : index
    %c0_1 = arith.constant 0 : index
    %3 = vector.load %arg2[%c1, %c0_1] : memref<4x128xf32, #tpu.memory_space<vmem>>, vector<1x128xf32>
    %4 = vector.shape_cast %3 : vector<1x128xf32> to vector<1x128xf32>
    %5 = vector.broadcast %4 : vector<1x128xf32> to vector<4x128xf32>
    %c2 = arith.constant 2 : index
    %c0_2 = arith.constant 0 : index
    %6 = vector.load %arg2[%c2, %c0_2] : memref<4x128xf32, #tpu.memory_space<vmem>>, vector<1x128xf32>
    %7 = vector.shape_cast %6 : vector<1x128xf32> to vector<1x128xf32>
    %8 = vector.broadcast %7 : vector<1x128xf32> to vector<4x128xf32>
    %c3 = arith.constant 3 : index
    %c0_3 = arith.constant 0 : index
    %9 = vector.load %arg2[%c3, %c0_3] : memref<4x128xf32, #tpu.memory_space<vmem>>, vector<1x128xf32>
    %10 = vector.shape_cast %9 : vector<1x128xf32> to vector<1x128xf32>
    %11 = vector.broadcast %10 : vector<1x128xf32> to vector<4x128xf32>
    %c0_4 = arith.constant 0 : index
    %c0_5 = arith.constant 0 : index
    %12 = vector.load %arg1[%c0_4, %c0_5] : memref<32x128xf32, #tpu.memory_space<vmem>>, vector<4x128xf32>
    %c4 = arith.constant 4 : index
    %c0_6 = arith.constant 0 : index
    %13 = vector.load %arg1[%c4, %c0_6] : memref<32x128xf32, #tpu.memory_space<vmem>>, vector<4x128xf32>
    %c8 = arith.constant 8 : index
    %c0_7 = arith.constant 0 : index
    %14 = vector.load %arg1[%c8, %c0_7] : memref<32x128xf32, #tpu.memory_space<vmem>>, vector<4x128xf32>
    %c12 = arith.constant 12 : index
    %c0_8 = arith.constant 0 : index
    %15 = vector.load %arg1[%c12, %c0_8] : memref<32x128xf32, #tpu.memory_space<vmem>>, vector<4x128xf32>
    %c16 = arith.constant 16 : index
    %c0_9 = arith.constant 0 : index
    %16 = vector.load %arg1[%c16, %c0_9] : memref<32x128xf32, #tpu.memory_space<vmem>>, vector<4x128xf32>
    %c20 = arith.constant 20 : index
    %c0_10 = arith.constant 0 : index
    %17 = vector.load %arg1[%c20, %c0_10] : memref<32x128xf32, #tpu.memory_space<vmem>>, vector<4x128xf32>
    %c24 = arith.constant 24 : index
    %c0_11 = arith.constant 0 : index
    %18 = vector.load %arg1[%c24, %c0_11] : memref<32x128xf32, #tpu.memory_space<vmem>>, vector<4x128xf32>
    %c28 = arith.constant 28 : index
    %c0_12 = arith.constant 0 : index
    %19 = vector.load %arg1[%c28, %c0_12] : memref<32x128xf32, #tpu.memory_space<vmem>>, vector<4x128xf32>
    %20 = arith.mulf %12, %2 : vector<4x128xf32>
    %21 = vector.extract_strided_slice %20 {offsets = [0, 0], sizes = [1, 128], strides = [1, 1]} : vector<4x128xf32> to vector<1x128xf32>
    %c0_13 = arith.constant 0 : index
    %c0_14 = arith.constant 0 : index
    %22 = vector.load %arg3[%c0_13, %c0_14] : memref<160x128xf32, #tpu.memory_space<vmem>>, vector<4x128xf32>
    %23 = vector.broadcast %21 : vector<1x128xf32> to vector<4x128xf32>
    %24 = arith.mulf %23, %22 : vector<4x128xf32>
    %25 = vector.extract_strided_slice %20 {offsets = [1, 0], sizes = [1, 128], strides = [1, 1]} : vector<4x128xf32> to vector<1x128xf32>
    %c4_15 = arith.constant 4 : index
    %c0_16 = arith.constant 0 : index
    %26 = vector.load %arg3[%c4_15, %c0_16] : memref<160x128xf32, #tpu.memory_space<vmem>>, vector<4x128xf32>
    %27 = vector.broadcast %25 : vector<1x128xf32> to vector<4x128xf32>
    %28 = arith.mulf %27, %26 : vector<4x128xf32>
    %29 = arith.addf %24, %28 : vector<4x128xf32>
    %30 = vector.extract_strided_slice %20 {offsets = [2, 0], sizes = [1, 128], strides = [1, 1]} : vector<4x128xf32> to vector<1x128xf32>
    %c8_17 = arith.constant 8 : index
    %c0_18 = arith.constant 0 : index
    %31 = vector.load %arg3[%c8_17, %c0_18] : memref<160x128xf32, #tpu.memory_space<vmem>>, vector<4x128xf32>
    %32 = vector.broadcast %30 : vector<1x128xf32> to vector<4x128xf32>
    %33 = arith.mulf %32, %31 : vector<4x128xf32>
    %34 = arith.addf %29, %33 : vector<4x128xf32>
    %35 = vector.extract_strided_slice %20 {offsets = [3, 0], sizes = [1, 128], strides = [1, 1]} : vector<4x128xf32> to vector<1x128xf32>
    %c12_19 = arith.constant 12 : index
    %c0_20 = arith.constant 0 : index
    %36 = vector.load %arg3[%c12_19, %c0_20] : memref<160x128xf32, #tpu.memory_space<vmem>>, vector<4x128xf32>
    %37 = vector.broadcast %35 : vector<1x128xf32> to vector<4x128xf32>
    %38 = arith.mulf %37, %36 : vector<4x128xf32>
    %39 = arith.addf %34, %38 : vector<4x128xf32>
    %40 = arith.mulf %13, %5 : vector<4x128xf32>
    %41 = arith.mulf %14, %8 : vector<4x128xf32>
    %42 = arith.addf %40, %41 : vector<4x128xf32>
    %43 = arith.mulf %15, %11 : vector<4x128xf32>
    %44 = arith.addf %42, %43 : vector<4x128xf32>
    %cst = arith.constant 0.577350259 : f32
    %45 = vector.broadcast %cst : f32 to vector<4x128xf32>
    %46 = arith.mulf %44, %45 : vector<4x128xf32>
    %47 = vector.extract_strided_slice %46 {offsets = [0, 0], sizes = [1, 128], strides = [1, 1]} : vector<4x128xf32> to vector<1x128xf32>
    %c16_21 = arith.constant 16 : index
    %c0_22 = arith.constant 0 : index
    %48 = vector.load %arg3[%c16_21, %c0_22] : memref<160x128xf32, #tpu.memory_space<vmem>>, vector<4x128xf32>
    %49 = vector.broadcast %47 : vector<1x128xf32> to vector<4x128xf32>
    %50 = arith.mulf %49, %48 : vector<4x128xf32>
    %51 = arith.addf %39, %50 : vector<4x128xf32>
    %52 = vector.extract_strided_slice %46 {offsets = [1, 0], sizes = [1, 128], strides = [1, 1]} : vector<4x128xf32> to vector<1x128xf32>
    %c20_23 = arith.constant 20 : index
    %c0_24 = arith.constant 0 : index
    %53 = vector.load %arg3[%c20_23, %c0_24] : memref<160x128xf32, #tpu.memory_space<vmem>>, vector<4x128xf32>
    %54 = vector.broadcast %52 : vector<1x128xf32> to vector<4x128xf32>
    %55 = arith.mulf %54, %53 : vector<4x128xf32>
    %56 = arith.addf %51, %55 : vector<4x128xf32>
    %57 = vector.extract_strided_slice %46 {offsets = [2, 0], sizes = [1, 128], strides = [1, 1]} : vector<4x128xf32> to vector<1x128xf32>
    %c24_25 = arith.constant 24 : index
    %c0_26 = arith.constant 0 : index
    %58 = vector.load %arg3[%c24_25, %c0_26] : memref<160x128xf32, #tpu.memory_space<vmem>>, vector<4x128xf32>
    %59 = vector.broadcast %57 : vector<1x128xf32> to vector<4x128xf32>
    %60 = arith.mulf %59, %58 : vector<4x128xf32>
    %61 = arith.addf %56, %60 : vector<4x128xf32>
    %62 = vector.extract_strided_slice %46 {offsets = [3, 0], sizes = [1, 128], strides = [1, 1]} : vector<4x128xf32> to vector<1x128xf32>
    %c28_27 = arith.constant 28 : index
    %c0_28 = arith.constant 0 : index
    %63 = vector.load %arg3[%c28_27, %c0_28] : memref<160x128xf32, #tpu.memory_space<vmem>>, vector<4x128xf32>
    %64 = vector.broadcast %62 : vector<1x128xf32> to vector<4x128xf32>
    %65 = arith.mulf %64, %63 : vector<4x128xf32>
    %66 = arith.addf %61, %65 : vector<4x128xf32>
    %cst_29 = arith.constant 0.353553385 : f32
    %67 = vector.broadcast %cst_29 : f32 to vector<4x128xf32>
    %68 = arith.mulf %66, %67 : vector<4x128xf32>
    %c0_30 = arith.constant 0 : index
    %c0_31 = arith.constant 0 : index
    %69 = vector.load %arg4[%c0_30, %c0_31] : memref<32x128xf32, #tpu.memory_space<vmem>>, vector<4x128xf32>
    tpu.vector_store %arg4[%c0_30, %c0_31], %68 {strides = array<i32>} : memref<32x128xf32, #tpu.memory_space<vmem>>, vector<4x128xf32>,
    %70 = arith.mulf %12, %5 : vector<4x128xf32>
    %71 = vector.extract_strided_slice %70 {offsets = [0, 0], sizes = [1, 128], strides = [1, 1]} : vector<4x128xf32> to vector<1x128xf32>
    %c32 = arith.constant 32 : index
    %c0_32 = arith.constant 0 : index
    %72 = vector.load %arg3[%c32, %c0_32] : memref<160x128xf32, #tpu.memory_space<vmem>>, vector<4x128xf32>
    %73 = vector.broadcast %71 : vector<1x128xf32> to vector<4x128xf32>
    %74 = arith.mulf %73, %72 : vector<4x128xf32>
    %75 = vector.extract_strided_slice %70 {offsets = [1, 0], sizes = [1, 128], strides = [1, 1]} : vector<4x128xf32> to vector<1x128xf32>
    %c36 = arith.constant 36 : index
    %c0_33 = arith.constant 0 : index
    %76 = vector.load %arg3[%c36, %c0_33] : memref<160x128xf32, #tpu.memory_space<vmem>>, vector<4x128xf32>
    %77 = vector.broadcast %75 : vector<1x128xf32> to vector<4x128xf32>
    %78 = arith.mulf %77, %76 : vector<4x128xf32>
    %79 = arith.addf %74, %78 : vector<4x128xf32>
    %80 = vector.extract_strided_slice %70 {offsets = [2, 0], sizes = [1, 128], strides = [1, 1]} : vector<4x128xf32> to vector<1x128xf32>
    %c40 = arith.constant 40 : index
    %c0_34 = arith.constant 0 : index
    %81 = vector.load %arg3[%c40, %c0_34] : memref<160x128xf32, #tpu.memory_space<vmem>>, vector<4x128xf32>
    %82 = vector.broadcast %80 : vector<1x128xf32> to vector<4x128xf32>
    %83 = arith.mulf %82, %81 : vector<4x128xf32>
    %84 = arith.addf %79, %83 : vector<4x128xf32>
    %85 = vector.extract_strided_slice %70 {offsets = [3, 0], sizes = [1, 128], strides = [1, 1]} : vector<4x128xf32> to vector<1x128xf32>
    %c44 = arith.constant 44 : index
    %c0_35 = arith.constant 0 : index
    %86 = vector.load %arg3[%c44, %c0_35] : memref<160x128xf32, #tpu.memory_space<vmem>>, vector<4x128xf32>
    %87 = vector.broadcast %85 : vector<1x128xf32> to vector<4x128xf32>
    %88 = arith.mulf %87, %86 : vector<4x128xf32>
    %89 = arith.addf %84, %88 : vector<4x128xf32>
    %90 = arith.mulf %13, %2 : vector<4x128xf32>
    %91 = vector.extract_strided_slice %90 {offsets = [0, 0], sizes = [1, 128], strides = [1, 1]} : vector<4x128xf32> to vector<1x128xf32>
    %c48 = arith.constant 48 : index
    %c0_36 = arith.constant 0 : index
    %92 = vector.load %arg3[%c48, %c0_36] : memref<160x128xf32, #tpu.memory_space<vmem>>, vector<4x128xf32>
    %93 = vector.broadcast %91 : vector<1x128xf32> to vector<4x128xf32>
    %94 = arith.mulf %93, %92 : vector<4x128xf32>
    %95 = arith.addf %89, %94 : vector<4x128xf32>
    %96 = vector.extract_strided_slice %90 {offsets = [1, 0], sizes = [1, 128], strides = [1, 1]} : vector<4x128xf32> to vector<1x128xf32>
    %c52 = arith.constant 52 : index
    %c0_37 = arith.constant 0 : index
    %97 = vector.load %arg3[%c52, %c0_37] : memref<160x128xf32, #tpu.memory_space<vmem>>, vector<4x128xf32>
    %98 = vector.broadcast %96 : vector<1x128xf32> to vector<4x128xf32>
    %99 = arith.mulf %98, %97 : vector<4x128xf32>
    %100 = arith.addf %95, %99 : vector<4x128xf32>
    %101 = vector.extract_strided_slice %90 {offsets = [2, 0], sizes = [1, 128], strides = [1, 1]} : vector<4x128xf32> to vector<1x128xf32>
    %c56 = arith.constant 56 : index
    %c0_38 = arith.constant 0 : index
    %102 = vector.load %arg3[%c56, %c0_38] : memref<160x128xf32, #tpu.memory_space<vmem>>, vector<4x128xf32>
    %103 = vector.broadcast %101 : vector<1x128xf32> to vector<4x128xf32>
    %104 = arith.mulf %103, %102 : vector<4x128xf32>
    %105 = arith.addf %100, %104 : vector<4x128xf32>
    %106 = vector.extract_strided_slice %90 {offsets = [3, 0], sizes = [1, 128], strides = [1, 1]} : vector<4x128xf32> to vector<1x128xf32>
    %c60 = arith.constant 60 : index
    %c0_39 = arith.constant 0 : index
    %107 = vector.load %arg3[%c60, %c0_39] : memref<160x128xf32, #tpu.memory_space<vmem>>, vector<4x128xf32>
    %108 = vector.broadcast %106 : vector<1x128xf32> to vector<4x128xf32>
    %109 = arith.mulf %108, %107 : vector<4x128xf32>
    %110 = arith.addf %105, %109 : vector<4x128xf32>
    %111 = arith.mulf %17, %11 : vector<4x128xf32>
    %112 = arith.mulf %18, %8 : vector<4x128xf32>
    %113 = arith.subf %111, %112 : vector<4x128xf32>
    %cst_40 = arith.constant 0.707106769 : f32
    %114 = vector.broadcast %cst_40 : f32 to vector<4x128xf32>
    %115 = arith.mulf %113, %114 : vector<4x128xf32>
    %116 = vector.extract_strided_slice %115 {offsets = [0, 0], sizes = [1, 128], strides = [1, 1]} : vector<4x128xf32> to vector<1x128xf32>
    %c64 = arith.constant 64 : index
    %c0_41 = arith.constant 0 : index
    %117 = vector.load %arg3[%c64, %c0_41] : memref<160x128xf32, #tpu.memory_space<vmem>>, vector<4x128xf32>
    %118 = vector.broadcast %116 : vector<1x128xf32> to vector<4x128xf32>
    %119 = arith.mulf %118, %117 : vector<4x128xf32>
    %120 = arith.addf %110, %119 : vector<4x128xf32>
    %121 = vector.extract_strided_slice %115 {offsets = [1, 0], sizes = [1, 128], strides = [1, 1]} : vector<4x128xf32> to vector<1x128xf32>
    %c68 = arith.constant 68 : index
    %c0_42 = arith.constant 0 : index
    %122 = vector.load %arg3[%c68, %c0_42] : memref<160x128xf32, #tpu.memory_space<vmem>>, vector<4x128xf32>
    %123 = vector.broadcast %121 : vector<1x128xf32> to vector<4x128xf32>
    %124 = arith.mulf %123, %122 : vector<4x128xf32>
    %125 = arith.addf %120, %124 : vector<4x128xf32>
    %126 = vector.extract_strided_slice %115 {offsets = [2, 0], sizes = [1, 128], strides = [1, 1]} : vector<4x128xf32> to vector<1x128xf32>
    %c72 = arith.constant 72 : index
    %c0_43 = arith.constant 0 : index
    %127 = vector.load %arg3[%c72, %c0_43] : memref<160x128xf32, #tpu.memory_space<vmem>>, vector<4x128xf32>
    %128 = vector.broadcast %126 : vector<1x128xf32> to vector<4x128xf32>
    %129 = arith.mulf %128, %127 : vector<4x128xf32>
    %130 = arith.addf %125, %129 : vector<4x128xf32>
    %131 = vector.extract_strided_slice %115 {offsets = [3, 0], sizes = [1, 128], strides = [1, 1]} : vector<4x128xf32> to vector<1x128xf32>
    %c76 = arith.constant 76 : index
    %c0_44 = arith.constant 0 : index
    %132 = vector.load %arg3[%c76, %c0_44] : memref<160x128xf32, #tpu.memory_space<vmem>>, vector<4x128xf32>
    %133 = vector.broadcast %131 : vector<1x128xf32> to vector<4x128xf32>
    %134 = arith.mulf %133, %132 : vector<4x128xf32>
    %135 = arith.addf %130, %134 : vector<4x128xf32>
    %cst_45 = arith.constant 0.288675129 : f32
    %136 = vector.broadcast %cst_45 : f32 to vector<4x128xf32>
    %137 = arith.mulf %135, %136 : vector<4x128xf32>
    %c4_46 = arith.constant 4 : index
    %c0_47 = arith.constant 0 : index
    %138 = vector.load %arg4[%c4_46, %c0_47] : memref<32x128xf32, #tpu.memory_space<vmem>>, vector<4x128xf32>
    tpu.vector_store %arg4[%c4_46, %c0_47], %137 {strides = array<i32>} : memref<32x128xf32, #tpu.memory_space<vmem>>, vector<4x128xf32>,
    %139 = arith.mulf %12, %8 : vector<4x128xf32>
    %140 = vector.extract_strided_slice %139 {offsets = [0, 0], sizes = [1, 128], strides = [1, 1]} : vector<4x128xf32> to vector<1x128xf32>
    %c32_48 = arith.constant 32 : index
    %c0_49 = arith.constant 0 : index
    %141 = vector.load %arg3[%c32_48, %c0_49] : memref<160x128xf32, #tpu.memory_space<vmem>>, vector<4x128xf32>
    %142 = vector.broadcast %140 : vector<1x128xf32> to vector<4x128xf32>
    %143 = arith.mulf %142, %141 : vector<4x128xf32>
    %144 = vector.extract_strided_slice %139 {offsets = [1, 0], sizes = [1, 128], strides = [1, 1]} : vector<4x128xf32> to vector<1x128xf32>
    %c36_50 = arith.constant 36 : index
    %c0_51 = arith.constant 0 : index
    %145 = vector.load %arg3[%c36_50, %c0_51] : memref<160x128xf32, #tpu.memory_space<vmem>>, vector<4x128xf32>
    %146 = vector.broadcast %144 : vector<1x128xf32> to vector<4x128xf32>
    %147 = arith.mulf %146, %145 : vector<4x128xf32>
    %148 = arith.addf %143, %147 : vector<4x128xf32>
    %149 = vector.extract_strided_slice %139 {offsets = [2, 0], sizes = [1, 128], strides = [1, 1]} : vector<4x128xf32> to vector<1x128xf32>
    %c40_52 = arith.constant 40 : index
    %c0_53 = arith.constant 0 : index
    %150 = vector.load %arg3[%c40_52, %c0_53] : memref<160x128xf32, #tpu.memory_space<vmem>>, vector<4x128xf32>
    %151 = vector.broadcast %149 : vector<1x128xf32> to vector<4x128xf32>
    %152 = arith.mulf %151, %150 : vector<4x128xf32>
    %153 = arith.addf %148, %152 : vector<4x128xf32>
    %154 = vector.extract_strided_slice %139 {offsets = [3, 0], sizes = [1, 128], strides = [1, 1]} : vector<4x128xf32> to vector<1x128xf32>
    %c44_54 = arith.constant 44 : index
    %c0_55 = arith.constant 0 : index
    %155 = vector.load %arg3[%c44_54, %c0_55] : memref<160x128xf32, #tpu.memory_space<vmem>>, vector<4x128xf32>
    %156 = vector.broadcast %154 : vector<1x128xf32> to vector<4x128xf32>
    %157 = arith.mulf %156, %155 : vector<4x128xf32>
    %158 = arith.addf %153, %157 : vector<4x128xf32>
    %159 = arith.mulf %14, %2 : vector<4x128xf32>
    %160 = vector.extract_strided_slice %159 {offsets = [0, 0], sizes = [1, 128], strides = [1, 1]} : vector<4x128xf32> to vector<1x128xf32>
    %c48_56 = arith.constant 48 : index
    %c0_57 = arith.constant 0 : index
    %161 = vector.load %arg3[%c48_56, %c0_57] : memref<160x128xf32, #tpu.memory_space<vmem>>, vector<4x128xf32>
    %162 = vector.broadcast %160 : vector<1x128xf32> to vector<4x128xf32>
    %163 = arith.mulf %162, %161 : vector<4x128xf32>
    %164 = arith.addf %158, %163 : vector<4x128xf32>
    %165 = vector.extract_strided_slice %159 {offsets = [1, 0], sizes = [1, 128], strides = [1, 1]} : vector<4x128xf32> to vector<1x128xf32>
    %c52_58 = arith.constant 52 : index
    %c0_59 = arith.constant 0 : index
    %166 = vector.load %arg3[%c52_58, %c0_59] : memref<160x128xf32, #tpu.memory_space<vmem>>, vector<4x128xf32>
    %167 = vector.broadcast %165 : vector<1x128xf32> to vector<4x128xf32>
    %168 = arith.mulf %167, %166 : vector<4x128xf32>
    %169 = arith.addf %164, %168 : vector<4x128xf32>
    %170 = vector.extract_strided_slice %159 {offsets = [2, 0], sizes = [1, 128], strides = [1, 1]} : vector<4x128xf32> to vector<1x128xf32>
    %c56_60 = arith.constant 56 : index
    %c0_61 = arith.constant 0 : index
    %171 = vector.load %arg3[%c56_60, %c0_61] : memref<160x128xf32, #tpu.memory_space<vmem>>, vector<4x128xf32>
    %172 = vector.broadcast %170 : vector<1x128xf32> to vector<4x128xf32>
    %173 = arith.mulf %172, %171 : vector<4x128xf32>
    %174 = arith.addf %169, %173 : vector<4x128xf32>
    %175 = vector.extract_strided_slice %159 {offsets = [3, 0], sizes = [1, 128], strides = [1, 1]} : vector<4x128xf32> to vector<1x128xf32>
    %c60_62 = arith.constant 60 : index
    %c0_63 = arith.constant 0 : index
    %176 = vector.load %arg3[%c60_62, %c0_63] : memref<160x128xf32, #tpu.memory_space<vmem>>, vector<4x128xf32>
    %177 = vector.broadcast %175 : vector<1x128xf32> to vector<4x128xf32>
    %178 = arith.mulf %177, %176 : vector<4x128xf32>
    %179 = arith.addf %174, %178 : vector<4x128xf32>
    %180 = arith.mulf %18, %5 : vector<4x128xf32>
    %181 = arith.mulf %16, %11 : vector<4x128xf32>
    %182 = arith.subf %180, %181 : vector<4x128xf32>
    %cst_64 = arith.constant 0.707106769 : f32
    %183 = vector.broadcast %cst_64 : f32 to vector<4x128xf32>
    %184 = arith.mulf %182, %183 : vector<4x128xf32>
    %185 = vector.extract_strided_slice %184 {offsets = [0, 0], sizes = [1, 128], strides = [1, 1]} : vector<4x128xf32> to vector<1x128xf32>
    %c64_65 = arith.constant 64 : index
    %c0_66 = arith.constant 0 : index
    %186 = vector.load %arg3[%c64_65, %c0_66] : memref<160x128xf32, #tpu.memory_space<vmem>>, vector<4x128xf32>
    %187 = vector.broadcast %185 : vector<1x128xf32> to vector<4x128xf32>
    %188 = arith.mulf %187, %186 : vector<4x128xf32>
    %189 = arith.addf %179, %188 : vector<4x128xf32>
    %190 = vector.extract_strided_slice %184 {offsets = [1, 0], sizes = [1, 128], strides = [1, 1]} : vector<4x128xf32> to vector<1x128xf32>
    %c68_67 = arith.constant 68 : index
    %c0_68 = arith.constant 0 : index
    %191 = vector.load %arg3[%c68_67, %c0_68] : memref<160x128xf32, #tpu.memory_space<vmem>>, vector<4x128xf32>
    %192 = vector.broadcast %190 : vector<1x128xf32> to vector<4x128xf32>
    %193 = arith.mulf %192, %191 : vector<4x128xf32>
    %194 = arith.addf %189, %193 : vector<4x128xf32>
    %195 = vector.extract_strided_slice %184 {offsets = [2, 0], sizes = [1, 128], strides = [1, 1]} : vector<4x128xf32> to vector<1x128xf32>
    %c72_69 = arith.constant 72 : index
    %c0_70 = arith.constant 0 : index
    %196 = vector.load %arg3[%c72_69, %c0_70] : memref<160x128xf32, #tpu.memory_space<vmem>>, vector<4x128xf32>
    %197 = vector.broadcast %195 : vector<1x128xf32> to vector<4x128xf32>
    %198 = arith.mulf %197, %196 : vector<4x128xf32>
    %199 = arith.addf %194, %198 : vector<4x128xf32>
    %200 = vector.extract_strided_slice %184 {offsets = [3, 0], sizes = [1, 128], strides = [1, 1]} : vector<4x128xf32> to vector<1x128xf32>
    %c76_71 = arith.constant 76 : index
    %c0_72 = arith.constant 0 : index
    %201 = vector.load %arg3[%c76_71, %c0_72] : memref<160x128xf32, #tpu.memory_space<vmem>>, vector<4x128xf32>
    %202 = vector.broadcast %200 : vector<1x128xf32> to vector<4x128xf32>
    %203 = arith.mulf %202, %201 : vector<4x128xf32>
    %204 = arith.addf %199, %203 : vector<4x128xf32>
    %cst_73 = arith.constant 0.288675129 : f32
    %205 = vector.broadcast %cst_73 : f32 to vector<4x128xf32>
    %206 = arith.mulf %204, %205 : vector<4x128xf32>
    %c8_74 = arith.constant 8 : index
    %c0_75 = arith.constant 0 : index
    %207 = vector.load %arg4[%c8_74, %c0_75] : memref<32x128xf32, #tpu.memory_space<vmem>>, vector<4x128xf32>
    tpu.vector_store %arg4[%c8_74, %c0_75], %206 {strides = array<i32>} : memref<32x128xf32, #tpu.memory_space<vmem>>, vector<4x128xf32>,
    %208 = arith.mulf %12, %11 : vector<4x128xf32>
    %209 = vector.extract_strided_slice %208 {offsets = [0, 0], sizes = [1, 128], strides = [1, 1]} : vector<4x128xf32> to vector<1x128xf32>
    %c32_76 = arith.constant 32 : index
    %c0_77 = arith.constant 0 : index
    %210 = vector.load %arg3[%c32_76, %c0_77] : memref<160x128xf32, #tpu.memory_space<vmem>>, vector<4x128xf32>
    %211 = vector.broadcast %209 : vector<1x128xf32> to vector<4x128xf32>
    %212 = arith.mulf %211, %210 : vector<4x128xf32>
    %213 = vector.extract_strided_slice %208 {offsets = [1, 0], sizes = [1, 128], strides = [1, 1]} : vector<4x128xf32> to vector<1x128xf32>
    %c36_78 = arith.constant 36 : index
    %c0_79 = arith.constant 0 : index
    %214 = vector.load %arg3[%c36_78, %c0_79] : memref<160x128xf32, #tpu.memory_space<vmem>>, vector<4x128xf32>
    %215 = vector.broadcast %213 : vector<1x128xf32> to vector<4x128xf32>
    %216 = arith.mulf %215, %214 : vector<4x128xf32>
    %217 = arith.addf %212, %216 : vector<4x128xf32>
    %218 = vector.extract_strided_slice %208 {offsets = [2, 0], sizes = [1, 128], strides = [1, 1]} : vector<4x128xf32> to vector<1x128xf32>
    %c40_80 = arith.constant 40 : index
    %c0_81 = arith.constant 0 : index
    %219 = vector.load %arg3[%c40_80, %c0_81] : memref<160x128xf32, #tpu.memory_space<vmem>>, vector<4x128xf32>
    %220 = vector.broadcast %218 : vector<1x128xf32> to vector<4x128xf32>
    %221 = arith.mulf %220, %219 : vector<4x128xf32>
    %222 = arith.addf %217, %221 : vector<4x128xf32>
    %223 = vector.extract_strided_slice %208 {offsets = [3, 0], sizes = [1, 128], strides = [1, 1]} : vector<4x128xf32> to vector<1x128xf32>
    %c44_82 = arith.constant 44 : index
    %c0_83 = arith.constant 0 : index
    %224 = vector.load %arg3[%c44_82, %c0_83] : memref<160x128xf32, #tpu.memory_space<vmem>>, vector<4x128xf32>
    %225 = vector.broadcast %223 : vector<1x128xf32> to vector<4x128xf32>
    %226 = arith.mulf %225, %224 : vector<4x128xf32>
    %227 = arith.addf %222, %226 : vector<4x128xf32>
    %228 = arith.mulf %15, %2 : vector<4x128xf32>
    %229 = vector.extract_strided_slice %228 {offsets = [0, 0], sizes = [1, 128], strides = [1, 1]} : vector<4x128xf32> to vector<1x128xf32>
    %c48_84 = arith.constant 48 : index
    %c0_85 = arith.constant 0 : index
    %230 = vector.load %arg3[%c48_84, %c0_85] : memref<160x128xf32, #tpu.memory_space<vmem>>, vector<4x128xf32>
    %231 = vector.broadcast %229 : vector<1x128xf32> to vector<4x128xf32>
    %232 = arith.mulf %231, %230 : vector<4x128xf32>
    %233 = arith.addf %227, %232 : vector<4x128xf32>
    %234 = vector.extract_strided_slice %228 {offsets = [1, 0], sizes = [1, 128], strides = [1, 1]} : vector<4x128xf32> to vector<1x128xf32>
    %c52_86 = arith.constant 52 : index
    %c0_87 = arith.constant 0 : index
    %235 = vector.load %arg3[%c52_86, %c0_87] : memref<160x128xf32, #tpu.memory_space<vmem>>, vector<4x128xf32>
    %236 = vector.broadcast %234 : vector<1x128xf32> to vector<4x128xf32>
    %237 = arith.mulf %236, %235 : vector<4x128xf32>
    %238 = arith.addf %233, %237 : vector<4x128xf32>
    %239 = vector.extract_strided_slice %228 {offsets = [2, 0], sizes = [1, 128], strides = [1, 1]} : vector<4x128xf32> to vector<1x128xf32>
    %c56_88 = arith.constant 56 : index
    %c0_89 = arith.constant 0 : index
    %240 = vector.load %arg3[%c56_88, %c0_89] : memref<160x128xf32, #tpu.memory_space<vmem>>, vector<4x128xf32>
    %241 = vector.broadcast %239 : vector<1x128xf32> to vector<4x128xf32>
    %242 = arith.mulf %241, %240 : vector<4x128xf32>
    %243 = arith.addf %238, %242 : vector<4x128xf32>
    %244 = vector.extract_strided_slice %228 {offsets = [3, 0], sizes = [1, 128], strides = [1, 1]} : vector<4x128xf32> to vector<1x128xf32>
    %c60_90 = arith.constant 60 : index
    %c0_91 = arith.constant 0 : index
    %245 = vector.load %arg3[%c60_90, %c0_91] : memref<160x128xf32, #tpu.memory_space<vmem>>, vector<4x128xf32>
    %246 = vector.broadcast %244 : vector<1x128xf32> to vector<4x128xf32>
    %247 = arith.mulf %246, %245 : vector<4x128xf32>
    %248 = arith.addf %243, %247 : vector<4x128xf32>
    %249 = arith.mulf %16, %8 : vector<4x128xf32>
    %250 = arith.mulf %17, %5 : vector<4x128xf32>
    %251 = arith.subf %249, %250 : vector<4x128xf32>
    %cst_92 = arith.constant 0.707106769 : f32
    %252 = vector.broadcast %cst_92 : f32 to vector<4x128xf32>
    %253 = arith.mulf %251, %252 : vector<4x128xf32>
    %254 = vector.extract_strided_slice %253 {offsets = [0, 0], sizes = [1, 128], strides = [1, 1]} : vector<4x128xf32> to vector<1x128xf32>
    %c64_93 = arith.constant 64 : index
    %c0_94 = arith.constant 0 : index
    %255 = vector.load %arg3[%c64_93, %c0_94] : memref<160x128xf32, #tpu.memory_space<vmem>>, vector<4x128xf32>
    %256 = vector.broadcast %254 : vector<1x128xf32> to vector<4x128xf32>
    %257 = arith.mulf %256, %255 : vector<4x128xf32>
    %258 = arith.addf %248, %257 : vector<4x128xf32>
    %259 = vector.extract_strided_slice %253 {offsets = [1, 0], sizes = [1, 128], strides = [1, 1]} : vector<4x128xf32> to vector<1x128xf32>
    %c68_95 = arith.constant 68 : index
    %c0_96 = arith.constant 0 : index
    %260 = vector.load %arg3[%c68_95, %c0_96] : memref<160x128xf32, #tpu.memory_space<vmem>>, vector<4x128xf32>
    %261 = vector.broadcast %259 : vector<1x128xf32> to vector<4x128xf32>
    %262 = arith.mulf %261, %260 : vector<4x128xf32>
    %263 = arith.addf %258, %262 : vector<4x128xf32>
    %264 = vector.extract_strided_slice %253 {offsets = [2, 0], sizes = [1, 128], strides = [1, 1]} : vector<4x128xf32> to vector<1x128xf32>
    %c72_97 = arith.constant 72 : index
    %c0_98 = arith.constant 0 : index
    %265 = vector.load %arg3[%c72_97, %c0_98] : memref<160x128xf32, #tpu.memory_space<vmem>>, vector<4x128xf32>
    %266 = vector.broadcast %264 : vector<1x128xf32> to vector<4x128xf32>
    %267 = arith.mulf %266, %265 : vector<4x128xf32>
    %268 = arith.addf %263, %267 : vector<4x128xf32>
    %269 = vector.extract_strided_slice %253 {offsets = [3, 0], sizes = [1, 128], strides = [1, 1]} : vector<4x128xf32> to vector<1x128xf32>
    %c76_99 = arith.constant 76 : index
    %c0_100 = arith.constant 0 : index
    %270 = vector.load %arg3[%c76_99, %c0_100] : memref<160x128xf32, #tpu.memory_space<vmem>>, vector<4x128xf32>
    %271 = vector.broadcast %269 : vector<1x128xf32> to vector<4x128xf32>
    %272 = arith.mulf %271, %270 : vector<4x128xf32>
    %273 = arith.addf %268, %272 : vector<4x128xf32>
    %cst_101 = arith.constant 0.288675129 : f32
    %274 = vector.broadcast %cst_101 : f32 to vector<4x128xf32>
    %275 = arith.mulf %273, %274 : vector<4x128xf32>
    %c12_102 = arith.constant 12 : index
    %c0_103 = arith.constant 0 : index
    %276 = vector.load %arg4[%c12_102, %c0_103] : memref<32x128xf32, #tpu.memory_space<vmem>>, vector<4x128xf32>
    tpu.vector_store %arg4[%c12_102, %c0_103], %275 {strides = array<i32>} : memref<32x128xf32, #tpu.memory_space<vmem>>, vector<4x128xf32>,
    %277 = arith.mulf %14, %11 : vector<4x128xf32>
    %278 = arith.mulf %15, %8 : vector<4x128xf32>
    %279 = arith.subf %277, %278 : vector<4x128xf32>
    %cst_104 = arith.constant 0.707106769 : f32
    %280 = vector.broadcast %cst_104 : f32 to vector<4x128xf32>
    %281 = arith.mulf %279, %280 : vector<4x128xf32>
    %282 = vector.extract_strided_slice %281 {offsets = [0, 0], sizes = [1, 128], strides = [1, 1]} : vector<4x128xf32> to vector<1x128xf32>
    %c80 = arith.constant 80 : index
    %c0_105 = arith.constant 0 : index
    %283 = vector.load %arg3[%c80, %c0_105] : memref<160x128xf32, #tpu.memory_space<vmem>>, vector<4x128xf32>
    %284 = vector.broadcast %282 : vector<1x128xf32> to vector<4x128xf32>
    %285 = arith.mulf %284, %283 : vector<4x128xf32>
    %286 = vector.extract_strided_slice %281 {offsets = [1, 0], sizes = [1, 128], strides = [1, 1]} : vector<4x128xf32> to vector<1x128xf32>
    %c84 = arith.constant 84 : index
    %c0_106 = arith.constant 0 : index
    %287 = vector.load %arg3[%c84, %c0_106] : memref<160x128xf32, #tpu.memory_space<vmem>>, vector<4x128xf32>
    %288 = vector.broadcast %286 : vector<1x128xf32> to vector<4x128xf32>
    %289 = arith.mulf %288, %287 : vector<4x128xf32>
    %290 = arith.addf %285, %289 : vector<4x128xf32>
    %291 = vector.extract_strided_slice %281 {offsets = [2, 0], sizes = [1, 128], strides = [1, 1]} : vector<4x128xf32> to vector<1x128xf32>
    %c88 = arith.constant 88 : index
    %c0_107 = arith.constant 0 : index
    %292 = vector.load %arg3[%c88, %c0_107] : memref<160x128xf32, #tpu.memory_space<vmem>>, vector<4x128xf32>
    %293 = vector.broadcast %291 : vector<1x128xf32> to vector<4x128xf32>
    %294 = arith.mulf %293, %292 : vector<4x128xf32>
    %295 = arith.addf %290, %294 : vector<4x128xf32>
    %296 = vector.extract_strided_slice %281 {offsets = [3, 0], sizes = [1, 128], strides = [1, 1]} : vector<4x128xf32> to vector<1x128xf32>
    %c92 = arith.constant 92 : index
    %c0_108 = arith.constant 0 : index
    %297 = vector.load %arg3[%c92, %c0_108] : memref<160x128xf32, #tpu.memory_space<vmem>>, vector<4x128xf32>
    %298 = vector.broadcast %296 : vector<1x128xf32> to vector<4x128xf32>
    %299 = arith.mulf %298, %297 : vector<4x128xf32>
    %300 = arith.addf %295, %299 : vector<4x128xf32>
    %301 = arith.mulf %16, %2 : vector<4x128xf32>
    %302 = vector.extract_strided_slice %301 {offsets = [0, 0], sizes = [1, 128], strides = [1, 1]} : vector<4x128xf32> to vector<1x128xf32>
    %c96 = arith.constant 96 : index
    %c0_109 = arith.constant 0 : index
    %303 = vector.load %arg3[%c96, %c0_109] : memref<160x128xf32, #tpu.memory_space<vmem>>, vector<4x128xf32>
    %304 = vector.broadcast %302 : vector<1x128xf32> to vector<4x128xf32>
    %305 = arith.mulf %304, %303 : vector<4x128xf32>
    %306 = arith.addf %300, %305 : vector<4x128xf32>
    %307 = vector.extract_strided_slice %301 {offsets = [1, 0], sizes = [1, 128], strides = [1, 1]} : vector<4x128xf32> to vector<1x128xf32>
    %c100 = arith.constant 100 : index
    %c0_110 = arith.constant 0 : index
    %308 = vector.load %arg3[%c100, %c0_110] : memref<160x128xf32, #tpu.memory_space<vmem>>, vector<4x128xf32>
    %309 = vector.broadcast %307 : vector<1x128xf32> to vector<4x128xf32>
    %310 = arith.mulf %309, %308 : vector<4x128xf32>
    %311 = arith.addf %306, %310 : vector<4x128xf32>
    %312 = vector.extract_strided_slice %301 {offsets = [2, 0], sizes = [1, 128], strides = [1, 1]} : vector<4x128xf32> to vector<1x128xf32>
    %c104 = arith.constant 104 : index
    %c0_111 = arith.constant 0 : index
    %313 = vector.load %arg3[%c104, %c0_111] : memref<160x128xf32, #tpu.memory_space<vmem>>, vector<4x128xf32>
    %314 = vector.broadcast %312 : vector<1x128xf32> to vector<4x128xf32>
    %315 = arith.mulf %314, %313 : vector<4x128xf32>
    %316 = arith.addf %311, %315 : vector<4x128xf32>
    %317 = vector.extract_strided_slice %301 {offsets = [3, 0], sizes = [1, 128], strides = [1, 1]} : vector<4x128xf32> to vector<1x128xf32>
    %c108 = arith.constant 108 : index
    %c0_112 = arith.constant 0 : index
    %318 = vector.load %arg3[%c108, %c0_112] : memref<160x128xf32, #tpu.memory_space<vmem>>, vector<4x128xf32>
    %319 = vector.broadcast %317 : vector<1x128xf32> to vector<4x128xf32>
    %320 = arith.mulf %319, %318 : vector<4x128xf32>
    %321 = arith.addf %316, %320 : vector<4x128xf32>
    %322 = arith.mulf %19, %5 : vector<4x128xf32>
    %323 = vector.extract_strided_slice %322 {offsets = [0, 0], sizes = [1, 128], strides = [1, 1]} : vector<4x128xf32> to vector<1x128xf32>
    %c112 = arith.constant 112 : index
    %c0_113 = arith.constant 0 : index
    %324 = vector.load %arg3[%c112, %c0_113] : memref<160x128xf32, #tpu.memory_space<vmem>>, vector<4x128xf32>
    %325 = vector.broadcast %323 : vector<1x128xf32> to vector<4x128xf32>
    %326 = arith.mulf %325, %324 : vector<4x128xf32>
    %327 = arith.addf %321, %326 : vector<4x128xf32>
    %328 = vector.extract_strided_slice %322 {offsets = [1, 0], sizes = [1, 128], strides = [1, 1]} : vector<4x128xf32> to vector<1x128xf32>
    %c116 = arith.constant 116 : index
    %c0_114 = arith.constant 0 : index
    %329 = vector.load %arg3[%c116, %c0_114] : memref<160x128xf32, #tpu.memory_space<vmem>>, vector<4x128xf32>
    %330 = vector.broadcast %328 : vector<1x128xf32> to vector<4x128xf32>
    %331 = arith.mulf %330, %329 : vector<4x128xf32>
    %332 = arith.addf %327, %331 : vector<4x128xf32>
    %333 = vector.extract_strided_slice %322 {offsets = [2, 0], sizes = [1, 128], strides = [1, 1]} : vector<4x128xf32> to vector<1x128xf32>
    %c120 = arith.constant 120 : index
    %c0_115 = arith.constant 0 : index
    %334 = vector.load %arg3[%c120, %c0_115] : memref<160x128xf32, #tpu.memory_space<vmem>>, vector<4x128xf32>
    %335 = vector.broadcast %333 : vector<1x128xf32> to vector<4x128xf32>
    %336 = arith.mulf %335, %334 : vector<4x128xf32>
    %337 = arith.addf %332, %336 : vector<4x128xf32>
    %338 = vector.extract_strided_slice %322 {offsets = [3, 0], sizes = [1, 128], strides = [1, 1]} : vector<4x128xf32> to vector<1x128xf32>
    %c124 = arith.constant 124 : index
    %c0_116 = arith.constant 0 : index
    %339 = vector.load %arg3[%c124, %c0_116] : memref<160x128xf32, #tpu.memory_space<vmem>>, vector<4x128xf32>
    %340 = vector.broadcast %338 : vector<1x128xf32> to vector<4x128xf32>
    %341 = arith.mulf %340, %339 : vector<4x128xf32>
    %342 = arith.addf %337, %341 : vector<4x128xf32>
    %cst_117 = arith.constant 0.288675129 : f32
    %343 = vector.broadcast %cst_117 : f32 to vector<4x128xf32>
    %344 = arith.mulf %342, %343 : vector<4x128xf32>
    %c16_118 = arith.constant 16 : index
    %c0_119 = arith.constant 0 : index
    %345 = vector.load %arg4[%c16_118, %c0_119] : memref<32x128xf32, #tpu.memory_space<vmem>>, vector<4x128xf32>
    tpu.vector_store %arg4[%c16_118, %c0_119], %344 {strides = array<i32>} : memref<32x128xf32, #tpu.memory_space<vmem>>, vector<4x128xf32>,
    %346 = arith.mulf %15, %5 : vector<4x128xf32>
    %347 = arith.mulf %13, %11 : vector<4x128xf32>
    %348 = arith.subf %346, %347 : vector<4x128xf32>
    %cst_120 = arith.constant 0.707106769 : f32
    %349 = vector.broadcast %cst_120 : f32 to vector<4x128xf32>
    %350 = arith.mulf %348, %349 : vector<4x128xf32>
    %351 = vector.extract_strided_slice %350 {offsets = [0, 0], sizes = [1, 128], strides = [1, 1]} : vector<4x128xf32> to vector<1x128xf32>
    %c80_121 = arith.constant 80 : index
    %c0_122 = arith.constant 0 : index
    %352 = vector.load %arg3[%c80_121, %c0_122] : memref<160x128xf32, #tpu.memory_space<vmem>>, vector<4x128xf32>
    %353 = vector.broadcast %351 : vector<1x128xf32> to vector<4x128xf32>
    %354 = arith.mulf %353, %352 : vector<4x128xf32>
    %355 = vector.extract_strided_slice %350 {offsets = [1, 0], sizes = [1, 128], strides = [1, 1]} : vector<4x128xf32> to vector<1x128xf32>
    %c84_123 = arith.constant 84 : index
    %c0_124 = arith.constant 0 : index
    %356 = vector.load %arg3[%c84_123, %c0_124] : memref<160x128xf32, #tpu.memory_space<vmem>>, vector<4x128xf32>
    %357 = vector.broadcast %355 : vector<1x128xf32> to vector<4x128xf32>
    %358 = arith.mulf %357, %356 : vector<4x128xf32>
    %359 = arith.addf %354, %358 : vector<4x128xf32>
    %360 = vector.extract_strided_slice %350 {offsets = [2, 0], sizes = [1, 128], strides = [1, 1]} : vector<4x128xf32> to vector<1x128xf32>
    %c88_125 = arith.constant 88 : index
    %c0_126 = arith.constant 0 : index
    %361 = vector.load %arg3[%c88_125, %c0_126] : memref<160x128xf32, #tpu.memory_space<vmem>>, vector<4x128xf32>
    %362 = vector.broadcast %360 : vector<1x128xf32> to vector<4x128xf32>
    %363 = arith.mulf %362, %361 : vector<4x128xf32>
    %364 = arith.addf %359, %363 : vector<4x128xf32>
    %365 = vector.extract_strided_slice %350 {offsets = [3, 0], sizes = [1, 128], strides = [1, 1]} : vector<4x128xf32> to vector<1x128xf32>
    %c92_127 = arith.constant 92 : index
    %c0_128 = arith.constant 0 : index
    %366 = vector.load %arg3[%c92_127, %c0_128] : memref<160x128xf32, #tpu.memory_space<vmem>>, vector<4x128xf32>
    %367 = vector.broadcast %365 : vector<1x128xf32> to vector<4x128xf32>
    %368 = arith.mulf %367, %366 : vector<4x128xf32>
    %369 = arith.addf %364, %368 : vector<4x128xf32>
    %370 = arith.mulf %17, %2 : vector<4x128xf32>
    %371 = vector.extract_strided_slice %370 {offsets = [0, 0], sizes = [1, 128], strides = [1, 1]} : vector<4x128xf32> to vector<1x128xf32>
    %c96_129 = arith.constant 96 : index
    %c0_130 = arith.constant 0 : index
    %372 = vector.load %arg3[%c96_129, %c0_130] : memref<160x128xf32, #tpu.memory_space<vmem>>, vector<4x128xf32>
    %373 = vector.broadcast %371 : vector<1x128xf32> to vector<4x128xf32>
    %374 = arith.mulf %373, %372 : vector<4x128xf32>
    %375 = arith.addf %369, %374 : vector<4x128xf32>
    %376 = vector.extract_strided_slice %370 {offsets = [1, 0], sizes = [1, 128], strides = [1, 1]} : vector<4x128xf32> to vector<1x128xf32>
    %c100_131 = arith.constant 100 : index
    %c0_132 = arith.constant 0 : index
    %377 = vector.load %arg3[%c100_131, %c0_132] : memref<160x128xf32, #tpu.memory_space<vmem>>, vector<4x128xf32>
    %378 = vector.broadcast %376 : vector<1x128xf32> to vector<4x128xf32>
    %379 = arith.mulf %378, %377 : vector<4x128xf32>
    %380 = arith.addf %375, %379 : vector<4x128xf32>
    %381 = vector.extract_strided_slice %370 {offsets = [2, 0], sizes = [1, 128], strides = [1, 1]} : vector<4x128xf32> to vector<1x128xf32>
    %c104_133 = arith.constant 104 : index
    %c0_134 = arith.constant 0 : index
    %382 = vector.load %arg3[%c104_133, %c0_134] : memref<160x128xf32, #tpu.memory_space<vmem>>, vector<4x128xf32>
    %383 = vector.broadcast %381 : vector<1x128xf32> to vector<4x128xf32>
    %384 = arith.mulf %383, %382 : vector<4x128xf32>
    %385 = arith.addf %380, %384 : vector<4x128xf32>
    %386 = vector.extract_strided_slice %370 {offsets = [3, 0], sizes = [1, 128], strides = [1, 1]} : vector<4x128xf32> to vector<1x128xf32>
    %c108_135 = arith.constant 108 : index
    %c0_136 = arith.constant 0 : index
    %387 = vector.load %arg3[%c108_135, %c0_136] : memref<160x128xf32, #tpu.memory_space<vmem>>, vector<4x128xf32>
    %388 = vector.broadcast %386 : vector<1x128xf32> to vector<4x128xf32>
    %389 = arith.mulf %388, %387 : vector<4x128xf32>
    %390 = arith.addf %385, %389 : vector<4x128xf32>
    %391 = arith.mulf %19, %8 : vector<4x128xf32>
    %392 = vector.extract_strided_slice %391 {offsets = [0, 0], sizes = [1, 128], strides = [1, 1]} : vector<4x128xf32> to vector<1x128xf32>
    %c112_137 = arith.constant 112 : index
    %c0_138 = arith.constant 0 : index
    %393 = vector.load %arg3[%c112_137, %c0_138] : memref<160x128xf32, #tpu.memory_space<vmem>>, vector<4x128xf32>
    %394 = vector.broadcast %392 : vector<1x128xf32> to vector<4x128xf32>
    %395 = arith.mulf %394, %393 : vector<4x128xf32>
    %396 = arith.addf %390, %395 : vector<4x128xf32>
    %397 = vector.extract_strided_slice %391 {offsets = [1, 0], sizes = [1, 128], strides = [1, 1]} : vector<4x128xf32> to vector<1x128xf32>
    %c116_139 = arith.constant 116 : index
    %c0_140 = arith.constant 0 : index
    %398 = vector.load %arg3[%c116_139, %c0_140] : memref<160x128xf32, #tpu.memory_space<vmem>>, vector<4x128xf32>
    %399 = vector.broadcast %397 : vector<1x128xf32> to vector<4x128xf32>
    %400 = arith.mulf %399, %398 : vector<4x128xf32>
    %401 = arith.addf %396, %400 : vector<4x128xf32>
    %402 = vector.extract_strided_slice %391 {offsets = [2, 0], sizes = [1, 128], strides = [1, 1]} : vector<4x128xf32> to vector<1x128xf32>
    %c120_141 = arith.constant 120 : index
    %c0_142 = arith.constant 0 : index
    %403 = vector.load %arg3[%c120_141, %c0_142] : memref<160x128xf32, #tpu.memory_space<vmem>>, vector<4x128xf32>
    %404 = vector.broadcast %402 : vector<1x128xf32> to vector<4x128xf32>
    %405 = arith.mulf %404, %403 : vector<4x128xf32>
    %406 = arith.addf %401, %405 : vector<4x128xf32>
    %407 = vector.extract_strided_slice %391 {offsets = [3, 0], sizes = [1, 128], strides = [1, 1]} : vector<4x128xf32> to vector<1x128xf32>
    %c124_143 = arith.constant 124 : index
    %c0_144 = arith.constant 0 : index
    %408 = vector.load %arg3[%c124_143, %c0_144] : memref<160x128xf32, #tpu.memory_space<vmem>>, vector<4x128xf32>
    %409 = vector.broadcast %407 : vector<1x128xf32> to vector<4x128xf32>
    %410 = arith.mulf %409, %408 : vector<4x128xf32>
    %411 = arith.addf %406, %410 : vector<4x128xf32>
    %cst_145 = arith.constant 0.288675129 : f32
    %412 = vector.broadcast %cst_145 : f32 to vector<4x128xf32>
    %413 = arith.mulf %411, %412 : vector<4x128xf32>
    %c20_146 = arith.constant 20 : index
    %c0_147 = arith.constant 0 : index
    %414 = vector.load %arg4[%c20_146, %c0_147] : memref<32x128xf32, #tpu.memory_space<vmem>>, vector<4x128xf32>
    tpu.vector_store %arg4[%c20_146, %c0_147], %413 {strides = array<i32>} : memref<32x128xf32, #tpu.memory_space<vmem>>, vector<4x128xf32>,
    %415 = arith.mulf %13, %8 : vector<4x128xf32>
    %416 = arith.mulf %14, %5 : vector<4x128xf32>
    %417 = arith.subf %415, %416 : vector<4x128xf32>
    %cst_148 = arith.constant 0.707106769 : f32
    %418 = vector.broadcast %cst_148 : f32 to vector<4x128xf32>
    %419 = arith.mulf %417, %418 : vector<4x128xf32>
    %420 = vector.extract_strided_slice %419 {offsets = [0, 0], sizes = [1, 128], strides = [1, 1]} : vector<4x128xf32> to vector<1x128xf32>
    %c80_149 = arith.constant 80 : index
    %c0_150 = arith.constant 0 : index
    %421 = vector.load %arg3[%c80_149, %c0_150] : memref<160x128xf32, #tpu.memory_space<vmem>>, vector<4x128xf32>
    %422 = vector.broadcast %420 : vector<1x128xf32> to vector<4x128xf32>
    %423 = arith.mulf %422, %421 : vector<4x128xf32>
    %424 = vector.extract_strided_slice %419 {offsets = [1, 0], sizes = [1, 128], strides = [1, 1]} : vector<4x128xf32> to vector<1x128xf32>
    %c84_151 = arith.constant 84 : index
    %c0_152 = arith.constant 0 : index
    %425 = vector.load %arg3[%c84_151, %c0_152] : memref<160x128xf32, #tpu.memory_space<vmem>>, vector<4x128xf32>
    %426 = vector.broadcast %424 : vector<1x128xf32> to vector<4x128xf32>
    %427 = arith.mulf %426, %425 : vector<4x128xf32>
    %428 = arith.addf %423, %427 : vector<4x128xf32>
    %429 = vector.extract_strided_slice %419 {offsets = [2, 0], sizes = [1, 128], strides = [1, 1]} : vector<4x128xf32> to vector<1x128xf32>
    %c88_153 = arith.constant 88 : index
    %c0_154 = arith.constant 0 : index
    %430 = vector.load %arg3[%c88_153, %c0_154] : memref<160x128xf32, #tpu.memory_space<vmem>>, vector<4x128xf32>
    %431 = vector.broadcast %429 : vector<1x128xf32> to vector<4x128xf32>
    %432 = arith.mulf %431, %430 : vector<4x128xf32>
    %433 = arith.addf %428, %432 : vector<4x128xf32>
    %434 = vector.extract_strided_slice %419 {offsets = [3, 0], sizes = [1, 128], strides = [1, 1]} : vector<4x128xf32> to vector<1x128xf32>
    %c92_155 = arith.constant 92 : index
    %c0_156 = arith.constant 0 : index
    %435 = vector.load %arg3[%c92_155, %c0_156] : memref<160x128xf32, #tpu.memory_space<vmem>>, vector<4x128xf32>
    %436 = vector.broadcast %434 : vector<1x128xf32> to vector<4x128xf32>
    %437 = arith.mulf %436, %435 : vector<4x128xf32>
    %438 = arith.addf %433, %437 : vector<4x128xf32>
    %439 = arith.mulf %18, %2 : vector<4x128xf32>
    %440 = vector.extract_strided_slice %439 {offsets = [0, 0], sizes = [1, 128], strides = [1, 1]} : vector<4x128xf32> to vector<1x128xf32>
    %c96_157 = arith.constant 96 : index
    %c0_158 = arith.constant 0 : index
    %441 = vector.load %arg3[%c96_157, %c0_158] : memref<160x128xf32, #tpu.memory_space<vmem>>, vector<4x128xf32>
    %442 = vector.broadcast %440 : vector<1x128xf32> to vector<4x128xf32>
    %443 = arith.mulf %442, %441 : vector<4x128xf32>
    %444 = arith.addf %438, %443 : vector<4x128xf32>
    %445 = vector.extract_strided_slice %439 {offsets = [1, 0], sizes = [1, 128], strides = [1, 1]} : vector<4x128xf32> to vector<1x128xf32>
    %c100_159 = arith.constant 100 : index
    %c0_160 = arith.constant 0 : index
    %446 = vector.load %arg3[%c100_159, %c0_160] : memref<160x128xf32, #tpu.memory_space<vmem>>, vector<4x128xf32>
    %447 = vector.broadcast %445 : vector<1x128xf32> to vector<4x128xf32>
    %448 = arith.mulf %447, %446 : vector<4x128xf32>
    %449 = arith.addf %444, %448 : vector<4x128xf32>
    %450 = vector.extract_strided_slice %439 {offsets = [2, 0], sizes = [1, 128], strides = [1, 1]} : vector<4x128xf32> to vector<1x128xf32>
    %c104_161 = arith.constant 104 : index
    %c0_162 = arith.constant 0 : index
    %451 = vector.load %arg3[%c104_161, %c0_162] : memref<160x128xf32, #tpu.memory_space<vmem>>, vector<4x128xf32>
    %452 = vector.broadcast %450 : vector<1x128xf32> to vector<4x128xf32>
    %453 = arith.mulf %452, %451 : vector<4x128xf32>
    %454 = arith.addf %449, %453 : vector<4x128xf32>
    %455 = vector.extract_strided_slice %439 {offsets = [3, 0], sizes = [1, 128], strides = [1, 1]} : vector<4x128xf32> to vector<1x128xf32>
    %c108_163 = arith.constant 108 : index
    %c0_164 = arith.constant 0 : index
    %456 = vector.load %arg3[%c108_163, %c0_164] : memref<160x128xf32, #tpu.memory_space<vmem>>, vector<4x128xf32>
    %457 = vector.broadcast %455 : vector<1x128xf32> to vector<4x128xf32>
    %458 = arith.mulf %457, %456 : vector<4x128xf32>
    %459 = arith.addf %454, %458 : vector<4x128xf32>
    %460 = arith.mulf %19, %11 : vector<4x128xf32>
    %461 = vector.extract_strided_slice %460 {offsets = [0, 0], sizes = [1, 128], strides = [1, 1]} : vector<4x128xf32> to vector<1x128xf32>
    %c112_165 = arith.constant 112 : index
    %c0_166 = arith.constant 0 : index
    %462 = vector.load %arg3[%c112_165, %c0_166] : memref<160x128xf32, #tpu.memory_space<vmem>>, vector<4x128xf32>
    %463 = vector.broadcast %461 : vector<1x128xf32> to vector<4x128xf32>
    %464 = arith.mulf %463, %462 : vector<4x128xf32>
    %465 = arith.addf %459, %464 : vector<4x128xf32>
    %466 = vector.extract_strided_slice %460 {offsets = [1, 0], sizes = [1, 128], strides = [1, 1]} : vector<4x128xf32> to vector<1x128xf32>
    %c116_167 = arith.constant 116 : index
    %c0_168 = arith.constant 0 : index
    %467 = vector.load %arg3[%c116_167, %c0_168] : memref<160x128xf32, #tpu.memory_space<vmem>>, vector<4x128xf32>
    %468 = vector.broadcast %466 : vector<1x128xf32> to vector<4x128xf32>
    %469 = arith.mulf %468, %467 : vector<4x128xf32>
    %470 = arith.addf %465, %469 : vector<4x128xf32>
    %471 = vector.extract_strided_slice %460 {offsets = [2, 0], sizes = [1, 128], strides = [1, 1]} : vector<4x128xf32> to vector<1x128xf32>
    %c120_169 = arith.constant 120 : index
    %c0_170 = arith.constant 0 : index
    %472 = vector.load %arg3[%c120_169, %c0_170] : memref<160x128xf32, #tpu.memory_space<vmem>>, vector<4x128xf32>
    %473 = vector.broadcast %471 : vector<1x128xf32> to vector<4x128xf32>
    %474 = arith.mulf %473, %472 : vector<4x128xf32>
    %475 = arith.addf %470, %474 : vector<4x128xf32>
    %476 = vector.extract_strided_slice %460 {offsets = [3, 0], sizes = [1, 128], strides = [1, 1]} : vector<4x128xf32> to vector<1x128xf32>
    %c124_171 = arith.constant 124 : index
    %c0_172 = arith.constant 0 : index
    %477 = vector.load %arg3[%c124_171, %c0_172] : memref<160x128xf32, #tpu.memory_space<vmem>>, vector<4x128xf32>
    %478 = vector.broadcast %476 : vector<1x128xf32> to vector<4x128xf32>
    %479 = arith.mulf %478, %477 : vector<4x128xf32>
    %480 = arith.addf %475, %479 : vector<4x128xf32>
    %cst_173 = arith.constant 0.288675129 : f32
    %481 = vector.broadcast %cst_173 : f32 to vector<4x128xf32>
    %482 = arith.mulf %480, %481 : vector<4x128xf32>
    %c24_174 = arith.constant 24 : index
    %c0_175 = arith.constant 0 : index
    %483 = vector.load %arg4[%c24_174, %c0_175] : memref<32x128xf32, #tpu.memory_space<vmem>>, vector<4x128xf32>
    tpu.vector_store %arg4[%c24_174, %c0_175], %482 {strides = array<i32>} : memref<32x128xf32, #tpu.memory_space<vmem>>, vector<4x128xf32>,
    %484 = arith.mulf %16, %5 : vector<4x128xf32>
    %485 = arith.mulf %17, %8 : vector<4x128xf32>
    %486 = arith.addf %484, %485 : vector<4x128xf32>
    %487 = arith.mulf %18, %11 : vector<4x128xf32>
    %488 = arith.addf %486, %487 : vector<4x128xf32>
    %cst_176 = arith.constant 0.577350259 : f32
    %489 = vector.broadcast %cst_176 : f32 to vector<4x128xf32>
    %490 = arith.mulf %488, %489 : vector<4x128xf32>
    %491 = vector.extract_strided_slice %490 {offsets = [0, 0], sizes = [1, 128], strides = [1, 1]} : vector<4x128xf32> to vector<1x128xf32>
    %c128 = arith.constant 128 : index
    %c0_177 = arith.constant 0 : index
    %492 = vector.load %arg3[%c128, %c0_177] : memref<160x128xf32, #tpu.memory_space<vmem>>, vector<4x128xf32>
    %493 = vector.broadcast %491 : vector<1x128xf32> to vector<4x128xf32>
    %494 = arith.mulf %493, %492 : vector<4x128xf32>
    %495 = vector.extract_strided_slice %490 {offsets = [1, 0], sizes = [1, 128], strides = [1, 1]} : vector<4x128xf32> to vector<1x128xf32>
    %c132 = arith.constant 132 : index
    %c0_178 = arith.constant 0 : index
    %496 = vector.load %arg3[%c132, %c0_178] : memref<160x128xf32, #tpu.memory_space<vmem>>, vector<4x128xf32>
    %497 = vector.broadcast %495 : vector<1x128xf32> to vector<4x128xf32>
    %498 = arith.mulf %497, %496 : vector<4x128xf32>
    %499 = arith.addf %494, %498 : vector<4x128xf32>
    %500 = vector.extract_strided_slice %490 {offsets = [2, 0], sizes = [1, 128], strides = [1, 1]} : vector<4x128xf32> to vector<1x128xf32>
    %c136 = arith.constant 136 : index
    %c0_179 = arith.constant 0 : index
    %501 = vector.load %arg3[%c136, %c0_179] : memref<160x128xf32, #tpu.memory_space<vmem>>, vector<4x128xf32>
    %502 = vector.broadcast %500 : vector<1x128xf32> to vector<4x128xf32>
    %503 = arith.mulf %502, %501 : vector<4x128xf32>
    %504 = arith.addf %499, %503 : vector<4x128xf32>
    %505 = vector.extract_strided_slice %490 {offsets = [3, 0], sizes = [1, 128], strides = [1, 1]} : vector<4x128xf32> to vector<1x128xf32>
    %c140 = arith.constant 140 : index
    %c0_180 = arith.constant 0 : index
    %506 = vector.load %arg3[%c140, %c0_180] : memref<160x128xf32, #tpu.memory_space<vmem>>, vector<4x128xf32>
    %507 = vector.broadcast %505 : vector<1x128xf32> to vector<4x128xf32>
    %508 = arith.mulf %507, %506 : vector<4x128xf32>
    %509 = arith.addf %504, %508 : vector<4x128xf32>
    %510 = arith.mulf %19, %2 : vector<4x128xf32>
    %511 = vector.extract_strided_slice %510 {offsets = [0, 0], sizes = [1, 128], strides = [1, 1]} : vector<4x128xf32> to vector<1x128xf32>
    %c144 = arith.constant 144 : index
    %c0_181 = arith.constant 0 : index
    %512 = vector.load %arg3[%c144, %c0_181] : memref<160x128xf32, #tpu.memory_space<vmem>>, vector<4x128xf32>
    %513 = vector.broadcast %511 : vector<1x128xf32> to vector<4x128xf32>
    %514 = arith.mulf %513, %512 : vector<4x128xf32>
    %515 = arith.addf %509, %514 : vector<4x128xf32>
    %516 = vector.extract_strided_slice %510 {offsets = [1, 0], sizes = [1, 128], strides = [1, 1]} : vector<4x128xf32> to vector<1x128xf32>
    %c148 = arith.constant 148 : index
    %c0_182 = arith.constant 0 : index
    %517 = vector.load %arg3[%c148, %c0_182] : memref<160x128xf32, #tpu.memory_space<vmem>>, vector<4x128xf32>
    %518 = vector.broadcast %516 : vector<1x128xf32> to vector<4x128xf32>
    %519 = arith.mulf %518, %517 : vector<4x128xf32>
    %520 = arith.addf %515, %519 : vector<4x128xf32>
    %521 = vector.extract_strided_slice %510 {offsets = [2, 0], sizes = [1, 128], strides = [1, 1]} : vector<4x128xf32> to vector<1x128xf32>
    %c152 = arith.constant 152 : index
    %c0_183 = arith.constant 0 : index
    %522 = vector.load %arg3[%c152, %c0_183] : memref<160x128xf32, #tpu.memory_space<vmem>>, vector<4x128xf32>
    %523 = vector.broadcast %521 : vector<1x128xf32> to vector<4x128xf32>
    %524 = arith.mulf %523, %522 : vector<4x128xf32>
    %525 = arith.addf %520, %524 : vector<4x128xf32>
    %526 = vector.extract_strided_slice %510 {offsets = [3, 0], sizes = [1, 128], strides = [1, 1]} : vector<4x128xf32> to vector<1x128xf32>
    %c156 = arith.constant 156 : index
    %c0_184 = arith.constant 0 : index
    %527 = vector.load %arg3[%c156, %c0_184] : memref<160x128xf32, #tpu.memory_space<vmem>>, vector<4x128xf32>
    %528 = vector.broadcast %526 : vector<1x128xf32> to vector<4x128xf32>
    %529 = arith.mulf %528, %527 : vector<4x128xf32>
    %530 = arith.addf %525, %529 : vector<4x128xf32>
    %cst_185 = arith.constant 0.353553385 : f32
    %531 = vector.broadcast %cst_185 : f32 to vector<4x128xf32>
    %532 = arith.mulf %530, %531 : vector<4x128xf32>
    %c28_186 = arith.constant 28 : index
    %c0_187 = arith.constant 0 : index
    %533 = vector.load %arg4[%c28_186, %c0_187] : memref<32x128xf32, #tpu.memory_space<vmem>>, vector<4x128xf32>
    tpu.vector_store %arg4[%c28_186, %c0_187], %532 {strides = array<i32>} : memref<32x128xf32, #tpu.memory_space<vmem>>, vector<4x128xf32>,
    return
  }
  func.func @transform_0(%arg0: i32) -> (i32, i32) {
    %c0_i32 = arith.constant 0 : i32
    %c0_i32_0 = arith.constant 0 : i32
    return %c0_i32, %arg0 : i32, i32
  }
  func.func @transform_1(%arg0: i32) -> (i32, i32) {
    %c0_i32 = arith.constant 0 : i32
    %c0_i32_0 = arith.constant 0 : i32
    return %c0_i32, %arg0 : i32, i32
  }
  func.func @transform_2(%arg0: i32) -> (i32, i32) {
    %c0_i32 = arith.constant 0 : i32
    %c0_i32_0 = arith.constant 0 : i32
    return %c0_i32, %arg0 : i32, i32
  }
  func.func @transform_3(%arg0: i32) -> (i32, i32) {
    %c0_i32 = arith.constant 0 : i32
    %c0_i32_0 = arith.constant 0 : i32
    return %c0_i32, %arg0 : i32, i32
  }
}

</mosaic_0001>

<llo_original>
// kernel: faster_tensor_product.1
$region0: #{faster_tensor_product.1}
  #allocation0 [shape = 'u32[]', space=smem, size = 0x4, offset = 0x4, fixed_abs, tag = 'smem constant byte address 0x4 - core index']
  #allocation1 [shape = 'u32[144,128]{1,0:T(1,128)}', space=vmem, size = 0x12000, scoped, tag = 'internal scratch']
  %s0 = inlined_call_operand.vmem [shape: f32[32,384], index: 0, kind: input, shape index: {}]
  %s1 = inlined_call_operand.vmem [shape: f32[4,384], index: 1, kind: input, shape index: {}]
  %s2 = inlined_call_operand.vmem [shape: f32[160,384], index: 2, kind: input, shape index: {}]
  %s3 = inlined_call_operand.vmem [shape: f32[32,384], index: 3, kind: output, shape index: {}]
  %s4 = sld [smem:[#allocation0]]
  $region155: #{faster_tensor_product.1} parent=0
    _
  %s6 = ssub.s32 1, %s4
  %s7 = scalar_select 0, %s6, %s4
  $region1: #{faster_tensor_product.1} parent=0
    #allocation2 [shape = 'u8[32768]{0}', space=vmem, size = 0x8000, scoped, tag = 'input window, operand 0']
    #allocation3 [shape = 'u8[163840]{0}', space=vmem, size = 0x28000, scoped, tag = 'input window, operand 2']
    #allocation4 [shape = 'u8[32768]{0}', space=vmem, size = 0x8000, scoped, tag = 'output window, operand 0']
    loop: start=0, step=1, limit=5
    $region2: #{faster_tensor_product.1} parent=1 // loop_pre_header
      _
    $region3: #{faster_tensor_product.1} parent=1 // loop_header
      %s9 = sphi 0, %s13
      %p10 = scmp.ge.s32.totalorder %s9, 5
      %s19 = sphi 0, %s21
      %s22 = sphi 0, %s19
      %s23 = sphi 0, %s22
      %s39 = sphi 0, %s23
      %s45 = sphi 0, %s47
      %s48 = sphi 0, %s45
      %s49 = sphi 0, %s48
      %s65 = sphi 0, %s49
      %s71 = sphi 0, %s73
      %s74 = sphi 0, %s71
      %s75 = sphi 0, %s74
      %s91 = sphi 0, %s75
      %s97 = sphi 0, %s99
      %s100 = sphi 0, %s97
      %s101 = sphi 0, %s100
      %s117 = sphi 0, %s101
    $region4: #{faster_tensor_product.1} parent=1 // loop_header_branch
      %12 = sbr.rel (%p10) target = $region8
    $region5: #{faster_tensor_product.1} parent=1 // loop_body
      %s14 = ssub.s32 %s9, 1
      %s15 = ssub.s32 %s9, 2
      %s16 = sadd.s32 %s9, 1
      %s17 = ssub.s32 %s9, %s16
      %p18 = scmp.eq.s32.totalorder %s17, 0
      %s20 = sadd.s32 %s19, 1
      %s21 = scalar_select %p18, %s19, %s20
      %p24 = pneg %p18
      %p25 = scmp.eq.s32.totalorder %s9, 2
      %p26 = por %p24, %p25
      %p27 = scmp.ne.s32.totalorder %s19, %s22
      %p28 = scmp.eq.s32.totalorder %s9, 0
      %p29 = por %p27, %p28
      %p30 = scmp.ne.s32.totalorder %s19, %s22
      %p31 = scmp.eq.s32.totalorder %s14, 2
      %p32 = por %p30, %p31
      %p33 = scmp.ne.s32.totalorder %s22, %s23
      %p34 = scmp.eq.s32.totalorder %s14, 0
      %p35 = por %p33, %p34
      %p36 = scmp.ne.s32.totalorder %s22, %s23
      %p37 = scmp.eq.s32.totalorder %s15, 2
      %p38 = por %p36, %p37
      %p40 = scmp.ne.s32.totalorder %s23, %s39
      %p41 = scmp.eq.s32.totalorder %s15, 0
      %p42 = por %p40, %p41
      %s43 = ssub.s32 %s9, %s16
      %p44 = scmp.eq.s32.totalorder %s43, 0
      %s46 = sadd.s32 %s45, 1
      %s47 = scalar_select %p44, %s45, %s46
      %p50 = pneg %p44
      %p51 = scmp.eq.s32.totalorder %s9, 2
      %p52 = por %p50, %p51
      %p53 = scmp.ne.s32.totalorder %s45, %s48
      %p54 = scmp.eq.s32.totalorder %s9, 0
      %p55 = por %p53, %p54
      %p56 = scmp.ne.s32.totalorder %s45, %s48
      %p57 = scmp.eq.s32.totalorder %s14, 2
      %p58 = por %p56, %p57
      %p59 = scmp.ne.s32.totalorder %s48, %s49
      %p60 = scmp.eq.s32.totalorder %s14, 0
      %p61 = por %p59, %p60
      %p62 = scmp.ne.s32.totalorder %s48, %s49
      %p63 = scmp.eq.s32.totalorder %s15, 2
      %p64 = por %p62, %p63
      %p66 = scmp.ne.s32.totalorder %s49, %s65
      %p67 = scmp.eq.s32.totalorder %s15, 0
      %p68 = por %p66, %p67
      %s69 = ssub.s32 %s9, %s16
      %p70 = scmp.eq.s32.totalorder %s69, 0
      %s72 = sadd.s32 %s71, 1
      %s73 = scalar_select %p70, %s71, %s72
      %p76 = pneg %p70
      %p77 = scmp.eq.s32.totalorder %s9, 2
      %p78 = por %p76, %p77
      %p79 = scmp.ne.s32.totalorder %s71, %s74
      %p80 = scmp.eq.s32.totalorder %s9, 0
      %p81 = por %p79, %p80
      %p82 = scmp.ne.s32.totalorder %s71, %s74
      %p83 = scmp.eq.s32.totalorder %s14, 2
      %p84 = por %p82, %p83
      %p85 = scmp.ne.s32.totalorder %s74, %s75
      %p86 = scmp.eq.s32.totalorder %s14, 0
      %p87 = por %p85, %p86
      %p88 = scmp.ne.s32.totalorder %s74, %s75
      %p89 = scmp.eq.s32.totalorder %s15, 2
      %p90 = por %p88, %p89
      %p92 = scmp.ne.s32.totalorder %s75, %s91
      %p93 = scmp.eq.s32.totalorder %s15, 0
      %p94 = por %p92, %p93
      %s95 = ssub.s32 %s9, %s16
      %p96 = scmp.eq.s32.totalorder %s95, 0
      %s98 = sadd.s32 %s97, 1
      %s99 = scalar_select %p96, %s97, %s98
      %p102 = pneg %p96
      %p103 = scmp.eq.s32.totalorder %s9, 2
      %p104 = por %p102, %p103
      %p105 = scmp.ne.s32.totalorder %s97, %s100
      %p106 = scmp.eq.s32.totalorder %s9, 0
      %p107 = por %p105, %p106
      %p108 = scmp.ne.s32.totalorder %s97, %s100
      %p109 = scmp.eq.s32.totalorder %s14, 2
      %p110 = por %p108, %p109
      %p111 = scmp.ne.s32.totalorder %s100, %s101
      %p112 = scmp.eq.s32.totalorder %s14, 0
      %p113 = por %p111, %p112
      %p114 = scmp.ne.s32.totalorder %s100, %s101
      %p115 = scmp.eq.s32.totalorder %s15, 2
      %p116 = por %p114, %p115
      %p118 = scmp.ne.s32.totalorder %s101, %s117
      %p119 = scmp.eq.s32.totalorder %s15, 0
      %p120 = por %p118, %p119
      %p121 = scmp.le.s32.totalorder 1, %s9
      %p122 = scmp.lt.s32.totalorder %s9, 4
      %p123 = pnand %p121, %p122
      %p124 = pneg %p123
      // Predicated region
      $region9: #{faster_tensor_product.1} parent=5 // pred_check
        _
      $region10: #{faster_tensor_product.1} parent=5 // pred_check_branch
        %126 = sbr.rel (%p123) target = $region12
      $region11: #{faster_tensor_product.1} parent=5 // pred_region
        %s127 = ssub.s32 %s9, 1
      $region12: #{faster_tensor_product.1} parent=5 // pred_fallthru
        _
      %p128 = scmp.lt.s32.totalorder %s9, 3
      // Predicated region
      $region13: #{faster_tensor_product.1} parent=5 // pred_check
        %p129 = pneg %p128
      $region14: #{faster_tensor_product.1} parent=5 // pred_check_branch
        %131 = sbr.rel (%p129) target = $region16
      $region15: #{faster_tensor_product.1} parent=5 // pred_region
        // Predicated region
        $region17: #{faster_tensor_product.1} parent=15 // pred_check
          %p132 = pneg %p29
        $region18: #{faster_tensor_product.1} parent=15 // pred_check_branch
          %134 = sbr.rel (%p132) target = $region20
        $region19: #{faster_tensor_product.1} parent=15 // pred_region
          %s135 = sand.u32 %s19, 1
          %s136 = sand.u32 %s19, 1
          %s137 = smul.addr %s136, 32
          %s138 = scalar_lea.vmem [#allocation2], %s137
          %s139 = smul.addr %s9, 8
          %s140 = scalar_lea.vmem %s0, %s139
          // Predicated region
          $region21: #{faster_tensor_product.1} parent=19 // pred_check
            _
          $region22: #{faster_tensor_product.1} parent=19 // pred_check_branch
            %142 = sbr.rel (0) target = $region24
          $region23: #{faster_tensor_product.1} parent=19 // pred_region
            // Predicated region
            $region25: #{faster_tensor_product.1} parent=23 // pred_check
              _
            $region26: #{faster_tensor_product.1} parent=23 // pred_check_branch
              %144 = sbr.rel (0) target = $region28
            $region27: #{faster_tensor_product.1} parent=23 // pred_region
              // Predicated region
              $region40: #{faster_tensor_product.1} parent=27 // pred_check
                _
              $region41: #{faster_tensor_product.1} parent=27 // pred_check_branch
                %165 = sbr.rel (0) target = $region43
              $region42: #{faster_tensor_product.1} parent=27 // pred_region
                loop: start=0, step=1, limit=1
                $region44: #{faster_tensor_product.1} parent=42 // loop_pre_header
                  _
                $region45: #{faster_tensor_product.1} parent=42 // loop_header
                  %s167 = sphi 0, %s171
                  %p168 = scmp.ge.s32.totalorder %s167, 1
                  %s172 = sphi %s140, %s140
                  %s173 = sphi %s138, %s138
                $region46: #{faster_tensor_product.1} parent=42 // loop_header_branch
                  %170 = sbr.rel (%p168) target = $region50
                $region47: #{faster_tensor_product.1} parent=42 // loop_body
                  %v174 = vld [vmem:[%s172] sm:$0xff]
                  %175 = vst [vmem:[%s173] sm:$0xff] %v174
                  %v176 = vld [vmem:[%s172 + $0x18] sm:$0xff]
                  %177 = vst [vmem:[%s173 + $0x8] sm:$0xff] %v176
                  %v178 = vld [vmem:[%s172 + $0x30] sm:$0xff]
                  %179 = vst [vmem:[%s173 + $0x10] sm:$0xff] %v178
                  %v180 = vld [vmem:[%s172 + $0x48] sm:$0xff]
                  %181 = vst [vmem:[%s173 + $0x18] sm:$0xff] %v180
                $region48: #{faster_tensor_product.1} parent=42 // loop_footer
                  %s171 = sadd.s32 1, %s167
                $region49: #{faster_tensor_product.1} parent=42 // loop_footer_branch
                  %166 = sbr.rel target = $region45
                $region50: #{faster_tensor_product.1} parent=42 // loop_exit
                  _
              $region43: #{faster_tensor_product.1} parent=27 // pred_fallthru
                _
              // Predicated region
              $region51: #{faster_tensor_product.1} parent=27 // pred_check
                _
              $region52: #{faster_tensor_product.1} parent=27 // pred_check_branch
                %183 = sbr.rel target = $region54
              $region53: #{faster_tensor_product.1} parent=27 // pred_region
                _
              $region54: #{faster_tensor_product.1} parent=27 // pred_fallthru
                _
            $region28: #{faster_tensor_product.1} parent=23 // pred_fallthru
              _
            // Predicated region
            $region29: #{faster_tensor_product.1} parent=23 // pred_check
              _
            $region30: #{faster_tensor_product.1} parent=23 // pred_check_branch
              %146 = sbr.rel target = $region32
            $region31: #{faster_tensor_product.1} parent=23 // pred_region
              loop: start=0, step=1, limit=1
              $region33: #{faster_tensor_product.1} parent=31 // loop_pre_header
                _
              $region34: #{faster_tensor_product.1} parent=31 // loop_header
                %s149 = sphi 0, %s153
                %p150 = scmp.ge.s32.totalorder %s149, 1
                %s154 = sphi %s140, %s140
                %s155 = sphi %s138, %s138
              $region35: #{faster_tensor_product.1} parent=31 // loop_header_branch
                %152 = sbr.rel (%p150) target = $region39
              $region36: #{faster_tensor_product.1} parent=31 // loop_body
                %v156 = vld [vmem:[%s154] sm:$0xff]
                %157 = vst [vmem:[%s155] sm:$0xff] %v156
                %v158 = vld [vmem:[%s154 + $0x18] sm:$0xff]
                %159 = vst [vmem:[%s155 + $0x8] sm:$0xff] %v158
                %v160 = vld [vmem:[%s154 + $0x30] sm:$0xff]
                %161 = vst [vmem:[%s155 + $0x10] sm:$0xff] %v160
                %v162 = vld [vmem:[%s154 + $0x48] sm:$0xff]
                %163 = vst [vmem:[%s155 + $0x18] sm:$0xff] %v162
              $region37: #{faster_tensor_product.1} parent=31 // loop_footer
                %s153 = sadd.s32 1, %s149
              $region38: #{faster_tensor_product.1} parent=31 // loop_footer_branch
                %148 = sbr.rel target = $region34
              $region39: #{faster_tensor_product.1} parent=31 // loop_exit
                _
            $region32: #{faster_tensor_product.1} parent=23 // pred_fallthru
              _
          $region24: #{faster_tensor_product.1} parent=19 // pred_fallthru
            _
          %184 = vnop
        $region20: #{faster_tensor_product.1} parent=15 // pred_fallthru
          _
        // Predicated region
        $region55: #{faster_tensor_product.1} parent=15 // pred_check
          %p185 = pneg %p55
        $region56: #{faster_tensor_product.1} parent=15 // pred_check_branch
          %187 = sbr.rel (%p185) target = $region58
        $region57: #{faster_tensor_product.1} parent=15 // pred_region
          %p188 = scmp.lt.s32.totalorder %s9, 2
          %s189 = scalar_select %p188, %s9, 2
          %s190 = smul.addr %s189, 4
          %s191 = scalar_lea.vmem %s1, %s190
        $region58: #{faster_tensor_product.1} parent=15 // pred_fallthru
          _
        // Predicated region
        $region59: #{faster_tensor_product.1} parent=15 // pred_check
          %p192 = pneg %p81
        $region60: #{faster_tensor_product.1} parent=15 // pred_check_branch
          %194 = sbr.rel (%p192) target = $region62
        $region61: #{faster_tensor_product.1} parent=15 // pred_region
          %s195 = sand.u32 %s71, 1
          %s196 = sand.u32 %s71, 1
          %s197 = smul.addr %s196, 160
          %s198 = scalar_lea.vmem [#allocation3], %s197
          %s199 = smul.addr %s9, 8
          %s200 = scalar_lea.vmem %s2, %s199
          // Predicated region
          $region63: #{faster_tensor_product.1} parent=61 // pred_check
            _
          $region64: #{faster_tensor_product.1} parent=61 // pred_check_branch
            %202 = sbr.rel (0) target = $region66
          $region65: #{faster_tensor_product.1} parent=61 // pred_region
            // Predicated region
            $region67: #{faster_tensor_product.1} parent=65 // pred_check
              _
            $region68: #{faster_tensor_product.1} parent=65 // pred_check_branch
              %204 = sbr.rel (0) target = $region70
            $region69: #{faster_tensor_product.1} parent=65 // pred_region
              // Predicated region
              $region82: #{faster_tensor_product.1} parent=69 // pred_check
                _
              $region83: #{faster_tensor_product.1} parent=69 // pred_check_branch
                %257 = sbr.rel (0) target = $region85
              $region84: #{faster_tensor_product.1} parent=69 // pred_region
                loop: start=0, step=1, limit=1
                $region86: #{faster_tensor_product.1} parent=84 // loop_pre_header
                  _
                $region87: #{faster_tensor_product.1} parent=84 // loop_header
                  %s259 = sphi 0, %s263
                  %p260 = scmp.ge.s32.totalorder %s259, 1
                  %s264 = sphi %s200, %s200
                  %s265 = sphi %s198, %s198
                $region88: #{faster_tensor_product.1} parent=84 // loop_header_branch
                  %262 = sbr.rel (%p260) target = $region92
                $region89: #{faster_tensor_product.1} parent=84 // loop_body
                  %v266 = vld [vmem:[%s264] sm:$0xff]
                  %267 = vst [vmem:[%s265] sm:$0xff] %v266
                  %v268 = vld [vmem:[%s264 + $0x18] sm:$0xff]
                  %269 = vst [vmem:[%s265 + $0x8] sm:$0xff] %v268
                  %v270 = vld [vmem:[%s264 + $0x30] sm:$0xff]
                  %271 = vst [vmem:[%s265 + $0x10] sm:$0xff] %v270
                  %v272 = vld [vmem:[%s264 + $0x48] sm:$0xff]
                  %273 = vst [vmem:[%s265 + $0x18] sm:$0xff] %v272
                  %v274 = vld [vmem:[%s264 + $0x60] sm:$0xff]
                  %275 = vst [vmem:[%s265 + $0x20] sm:$0xff] %v274
                  %v276 = vld [vmem:[%s264 + $0x78] sm:$0xff]
                  %277 = vst [vmem:[%s265 + $0x28] sm:$0xff] %v276
                  %v278 = vld [vmem:[%s264 + $0x90] sm:$0xff]
                  %279 = vst [vmem:[%s265 + $0x30] sm:$0xff] %v278
                  %v280 = vld [vmem:[%s264 + $0xa8] sm:$0xff]
                  %281 = vst [vmem:[%s265 + $0x38] sm:$0xff] %v280
                  %v282 = vld [vmem:[%s264 + $0xc0] sm:$0xff]
                  %283 = vst [vmem:[%s265 + $0x40] sm:$0xff] %v282
                  %v284 = vld [vmem:[%s264 + $0xd8] sm:$0xff]
                  %285 = vst [vmem:[%s265 + $0x48] sm:$0xff] %v284
                  %v286 = vld [vmem:[%s264 + $0xf0] sm:$0xff]
                  %287 = vst [vmem:[%s265 + $0x50] sm:$0xff] %v286
                  %v288 = vld [vmem:[%s264 + $0x108] sm:$0xff]
                  %289 = vst [vmem:[%s265 + $0x58] sm:$0xff] %v288
                  %v290 = vld [vmem:[%s264 + $0x120] sm:$0xff]
                  %291 = vst [vmem:[%s265 + $0x60] sm:$0xff] %v290
                  %v292 = vld [vmem:[%s264 + $0x138] sm:$0xff]
                  %293 = vst [vmem:[%s265 + $0x68] sm:$0xff] %v292
                  %v294 = vld [vmem:[%s264 + $0x150] sm:$0xff]
                  %295 = vst [vmem:[%s265 + $0x70] sm:$0xff] %v294
                  %v296 = vld [vmem:[%s264 + $0x168] sm:$0xff]
                  %297 = vst [vmem:[%s265 + $0x78] sm:$0xff] %v296
                  %v298 = vld [vmem:[%s264 + $0x180] sm:$0xff]
                  %299 = vst [vmem:[%s265 + $0x80] sm:$0xff] %v298
                  %v300 = vld [vmem:[%s264 + $0x198] sm:$0xff]
                  %301 = vst [vmem:[%s265 + $0x88] sm:$0xff] %v300
                  %v302 = vld [vmem:[%s264 + $0x1b0] sm:$0xff]
                  %303 = vst [vmem:[%s265 + $0x90] sm:$0xff] %v302
                  %v304 = vld [vmem:[%s264 + $0x1c8] sm:$0xff]
                  %305 = vst [vmem:[%s265 + $0x98] sm:$0xff] %v304
                $region90: #{faster_tensor_product.1} parent=84 // loop_footer
                  %s263 = sadd.s32 1, %s259
                $region91: #{faster_tensor_product.1} parent=84 // loop_footer_branch
                  %258 = sbr.rel target = $region87
                $region92: #{faster_tensor_product.1} parent=84 // loop_exit
                  _
              $region85: #{faster_tensor_product.1} parent=69 // pred_fallthru
                _
              // Predicated region
              $region93: #{faster_tensor_product.1} parent=69 // pred_check
                _
              $region94: #{faster_tensor_product.1} parent=69 // pred_check_branch
                %307 = sbr.rel target = $region96
              $region95: #{faster_tensor_product.1} parent=69 // pred_region
                _
              $region96: #{faster_tensor_product.1} parent=69 // pred_fallthru
                _
            $region70: #{faster_tensor_product.1} parent=65 // pred_fallthru
              _
            // Predicated region
            $region71: #{faster_tensor_product.1} parent=65 // pred_check
              _
            $region72: #{faster_tensor_product.1} parent=65 // pred_check_branch
              %206 = sbr.rel target = $region74
            $region73: #{faster_tensor_product.1} parent=65 // pred_region
              loop: start=0, step=1, limit=1
              $region75: #{faster_tensor_product.1} parent=73 // loop_pre_header
                _
              $region76: #{faster_tensor_product.1} parent=73 // loop_header
                %s209 = sphi 0, %s213
                %p210 = scmp.ge.s32.totalorder %s209, 1
                %s214 = sphi %s200, %s200
                %s215 = sphi %s198, %s198
              $region77: #{faster_tensor_product.1} parent=73 // loop_header_branch
                %212 = sbr.rel (%p210) target = $region81
              $region78: #{faster_tensor_product.1} parent=73 // loop_body
                %v216 = vld [vmem:[%s214] sm:$0xff]
                %217 = vst [vmem:[%s215] sm:$0xff] %v216
                %v218 = vld [vmem:[%s214 + $0x18] sm:$0xff]
                %219 = vst [vmem:[%s215 + $0x8] sm:$0xff] %v218
                %v220 = vld [vmem:[%s214 + $0x30] sm:$0xff]
                %221 = vst [vmem:[%s215 + $0x10] sm:$0xff] %v220
                %v222 = vld [vmem:[%s214 + $0x48] sm:$0xff]
                %223 = vst [vmem:[%s215 + $0x18] sm:$0xff] %v222
                %v224 = vld [vmem:[%s214 + $0x60] sm:$0xff]
                %225 = vst [vmem:[%s215 + $0x20] sm:$0xff] %v224
                %v226 = vld [vmem:[%s214 + $0x78] sm:$0xff]
                %227 = vst [vmem:[%s215 + $0x28] sm:$0xff] %v226
                %v228 = vld [vmem:[%s214 + $0x90] sm:$0xff]
                %229 = vst [vmem:[%s215 + $0x30] sm:$0xff] %v228
                %v230 = vld [vmem:[%s214 + $0xa8] sm:$0xff]
                %231 = vst [vmem:[%s215 + $0x38] sm:$0xff] %v230
                %v232 = vld [vmem:[%s214 + $0xc0] sm:$0xff]
                %233 = vst [vmem:[%s215 + $0x40] sm:$0xff] %v232
                %v234 = vld [vmem:[%s214 + $0xd8] sm:$0xff]
                %235 = vst [vmem:[%s215 + $0x48] sm:$0xff] %v234
                %v236 = vld [vmem:[%s214 + $0xf0] sm:$0xff]
                %237 = vst [vmem:[%s215 + $0x50] sm:$0xff] %v236
                %v238 = vld [vmem:[%s214 + $0x108] sm:$0xff]
                %239 = vst [vmem:[%s215 + $0x58] sm:$0xff] %v238
                %v240 = vld [vmem:[%s214 + $0x120] sm:$0xff]
                %241 = vst [vmem:[%s215 + $0x60] sm:$0xff] %v240
                %v242 = vld [vmem:[%s214 + $0x138] sm:$0xff]
                %243 = vst [vmem:[%s215 + $0x68] sm:$0xff] %v242
                %v244 = vld [vmem:[%s214 + $0x150] sm:$0xff]
                %245 = vst [vmem:[%s215 + $0x70] sm:$0xff] %v244
                %v246 = vld [vmem:[%s214 + $0x168] sm:$0xff]
                %247 = vst [vmem:[%s215 + $0x78] sm:$0xff] %v246
                %v248 = vld [vmem:[%s214 + $0x180] sm:$0xff]
                %249 = vst [vmem:[%s215 + $0x80] sm:$0xff] %v248
                %v250 = vld [vmem:[%s214 + $0x198] sm:$0xff]
                %251 = vst [vmem:[%s215 + $0x88] sm:$0xff] %v250
                %v252 = vld [vmem:[%s214 + $0x1b0] sm:$0xff]
                %253 = vst [vmem:[%s215 + $0x90] sm:$0xff] %v252
                %v254 = vld [vmem:[%s214 + $0x1c8] sm:$0xff]
                %255 = vst [vmem:[%s215 + $0x98] sm:$0xff] %v254
              $region79: #{faster_tensor_product.1} parent=73 // loop_footer
                %s213 = sadd.s32 1, %s209
              $region80: #{faster_tensor_product.1} parent=73 // loop_footer_branch
                %208 = sbr.rel target = $region76
              $region81: #{faster_tensor_product.1} parent=73 // loop_exit
                _
            $region74: #{faster_tensor_product.1} parent=65 // pred_fallthru
              _
          $region66: #{faster_tensor_product.1} parent=61 // pred_fallthru
            _
          %308 = vnop
        $region62: #{faster_tensor_product.1} parent=15 // pred_fallthru
          _
      $region16: #{faster_tensor_product.1} parent=5 // pred_fallthru
        _
      %p309 = scmp.le.s32.totalorder 1, %s9
      %p310 = scmp.lt.s32.totalorder %s9, 4
      %p311 = pnand %p309, %p310
      %p312 = pneg %p311
      // Predicated region
      $region97: #{faster_tensor_product.1} parent=5 // pred_check
        _
      $region98: #{faster_tensor_product.1} parent=5 // pred_check_branch
        %314 = sbr.rel (%p311) target = $region100
      $region99: #{faster_tensor_product.1} parent=5 // pred_region
        %s315 = ssub.s32 %s9, 1
        %s316 = sand.u32 %s22, 1
        %s317 = sand.u32 %s22, 1
        %s318 = smul.addr %s317, 32
        %s319 = scalar_lea.vmem [#allocation2], %s318
        // Predicated region
        $region101: #{faster_tensor_product.1} parent=99 // pred_check
          %p320 = pneg %p35
        $region102: #{faster_tensor_product.1} parent=99 // pred_check_branch
          %322 = sbr.rel (%p320) target = $region104
        $region103: #{faster_tensor_product.1} parent=99 // pred_region
          _
        $region104: #{faster_tensor_product.1} parent=99 // pred_fallthru
          _
        %s323 = sand.u32 %s74, 1
        %s324 = sand.u32 %s74, 1
        %s325 = smul.addr %s324, 160
        %s326 = scalar_lea.vmem [#allocation3], %s325
        // Predicated region
        $region105: #{faster_tensor_product.1} parent=99 // pred_check
          %p327 = pneg %p87
        $region106: #{faster_tensor_product.1} parent=99 // pred_check_branch
          %329 = sbr.rel (%p327) target = $region108
        $region107: #{faster_tensor_product.1} parent=99 // pred_region
          _
        $region108: #{faster_tensor_product.1} parent=99 // pred_fallthru
          _
        %s330 = sand.u32 %s22, 1
        %s331 = sand.u32 %s22, 1
        %s332 = smul.addr %s331, 32
        %s333 = scalar_lea.vmem [#allocation2], %s332
        %p334 = pneg %p35
        %p335 = pneg %p32
        %p336 = scmp.lt.s32.totalorder %s14, 2
        %s337 = scalar_select %p336, %s14, 2
        %s338 = smul.addr %s337, 4
        %s339 = scalar_lea.vmem %s1, %s338
        %p340 = pneg %p61
        %p341 = pneg %p58
        %s342 = sand.u32 %s74, 1
        %s343 = sand.u32 %s74, 1
        %s344 = smul.addr %s343, 160
        %s345 = scalar_lea.vmem [#allocation3], %s344
        %p346 = pneg %p87
        %p347 = pneg %p84
        %p348 = pneg %p113
        %p349 = pneg %p110
        %s350 = sand.u32 %s100, 1
        %s351 = sand.u32 %s100, 1
        %s352 = smul.addr %s351, 32
        %s353 = scalar_lea.vmem [#allocation4], %s352
        %p354 = scmp.lt.s32.totalorder %s14, 2
        %s355 = scalar_select %p354, %s14, 2
        %s356 = smul.addr %s355, 4
        %s357 = scalar_lea.vmem %s1, %s356
        %v358 = vld [vmem:[%s357] sm:$0x1]
        %v359 = vlaneseq
        %v360 = vshrl.u32 %v359, 7
        %v361 = vsub.s32 0, %v360
        %v362 = vrot.slane %v358, %v361
        %v363 = vld [vmem:[%s357 + $0x1] sm:$0x1]
        %v364 = vlaneseq
        %v365 = vshrl.u32 %v364, 7
        %v366 = vsub.s32 0, %v365
        %v367 = vrot.slane %v363, %v366
        %v368 = vld [vmem:[%s357 + $0x2] sm:$0x1]
        %v369 = vlaneseq
        %v370 = vshrl.u32 %v369, 7
        %v371 = vsub.s32 0, %v370
        %v372 = vrot.slane %v368, %v371
        %v373 = vld [vmem:[%s357 + $0x3] sm:$0x1]
        %v374 = vlaneseq
        %v375 = vshrl.u32 %v374, 7
        %v376 = vsub.s32 0, %v375
        %v377 = vrot.slane %v373, %v376
        %v378 = vld [vmem:[%s319] sm:$0xf]
        %v379 = vld [vmem:[%s319 + $0x4] sm:$0xf]
        %v380 = vld [vmem:[%s319 + $0x8] sm:$0xf]
        %v381 = vld [vmem:[%s319 + $0xc] sm:$0xf]
        %v382 = vld [vmem:[%s319 + $0x10] sm:$0xf]
        %v383 = vld [vmem:[%s319 + $0x14] sm:$0xf]
        %v384 = vld [vmem:[%s319 + $0x18] sm:$0xf]
        %v385 = vld [vmem:[%s319 + $0x1c] sm:$0xf]
        %v386 = vmul.f32 %v378, %v362
        %v387 = vld [vmem:[%s326] sm:$0xf]
        %v388 = vlaneseq
        %v389 = vshrl.u32 %v388, 7
        %v390 = vsub.s32 0, %v389
        %v391 = vrot.slane %v386, %v390
        %v392 = vmul.f32 %v391, %v387
        %v393 = vld [vmem:[%s326 + $0x4] sm:$0xf]
        %v394 = vlaneseq
        %v395 = vshrl.u32 %v394, 7
        %v396 = vsub.s32 1, %v395
        %v397 = vrot.slane %v386, %v396
        %v398 = vmul.f32 %v397, %v393
        %v399 = vadd.f32 %v392, %v398
        %v400 = vld [vmem:[%s326 + $0x8] sm:$0xf]
        %v401 = vlaneseq
        %v402 = vshrl.u32 %v401, 7
        %v403 = vsub.s32 2, %v402
        %v404 = vrot.slane %v386, %v403
        %v405 = vmul.f32 %v404, %v400
        %v406 = vadd.f32 %v399, %v405
        %v407 = vld [vmem:[%s326 + $0xc] sm:$0xf]
        %v408 = vlaneseq
        %v409 = vshrl.u32 %v408, 7
        %v410 = vsub.s32 3, %v409
        %v411 = vrot.slane %v386, %v410
        %v412 = vmul.f32 %v411, %v407
        %v413 = vadd.f32 %v406, %v412
        %v414 = vmul.f32 %v379, %v367
        %v415 = vmul.f32 %v380, %v372
        %v416 = vadd.f32 %v414, %v415
        %v417 = vmul.f32 %v381, %v377
        %v418 = vadd.f32 %v416, %v417
        %v419 = vmul.f32 %v418, 0.57735026
        %v420 = vld [vmem:[%s326 + $0x10] sm:$0xf]
        %v421 = vlaneseq
        %v422 = vshrl.u32 %v421, 7
        %v423 = vsub.s32 0, %v422
        %v424 = vrot.slane %v419, %v423
        %v425 = vmul.f32 %v424, %v420
        %v426 = vadd.f32 %v413, %v425
        %v427 = vld [vmem:[%s326 + $0x14] sm:$0xf]
        %v428 = vlaneseq
        %v429 = vshrl.u32 %v428, 7
        %v430 = vsub.s32 1, %v429
        %v431 = vrot.slane %v419, %v430
        %v432 = vmul.f32 %v431, %v427
        %v433 = vadd.f32 %v426, %v432
        %v434 = vld [vmem:[%s326 + $0x18] sm:$0xf]
        %v435 = vlaneseq
        %v436 = vshrl.u32 %v435, 7
        %v437 = vsub.s32 2, %v436
        %v438 = vrot.slane %v419, %v437
        %v439 = vmul.f32 %v438, %v434
        %v440 = vadd.f32 %v433, %v439
        %v441 = vld [vmem:[%s326 + $0x1c] sm:$0xf]
        %v442 = vlaneseq
        %v443 = vshrl.u32 %v442, 7
        %v444 = vsub.s32 3, %v443
        %v445 = vrot.slane %v419, %v444
        %v446 = vmul.f32 %v445, %v441
        %v447 = vadd.f32 %v440, %v446
        %v448 = vmul.f32 %v447, 0.35355338
        %449 = vst [vmem:[%s353] sm:$0xf] %v448
        %v450 = vmul.f32 %v378, %v367
        %v451 = vld [vmem:[%s326 + $0x20] sm:$0xf]
        %v452 = vlaneseq
        %v453 = vshrl.u32 %v452, 7
        %v454 = vsub.s32 0, %v453
        %v455 = vrot.slane %v450, %v454
        %v456 = vmul.f32 %v455, %v451
        %v457 = vld [vmem:[%s326 + $0x24] sm:$0xf]
        %v458 = vlaneseq
        %v459 = vshrl.u32 %v458, 7
        %v460 = vsub.s32 1, %v459
        %v461 = vrot.slane %v450, %v460
        %v462 = vmul.f32 %v461, %v457
        %v463 = vadd.f32 %v456, %v462
        %v464 = vld [vmem:[%s326 + $0x28] sm:$0xf]
        %v465 = vlaneseq
        %v466 = vshrl.u32 %v465, 7
        %v467 = vsub.s32 2, %v466
        %v468 = vrot.slane %v450, %v467
        %v469 = vmul.f32 %v468, %v464
        %v470 = vadd.f32 %v463, %v469
        %v471 = vld [vmem:[%s326 + $0x2c] sm:$0xf]
        %v472 = vlaneseq
        %v473 = vshrl.u32 %v472, 7
        %v474 = vsub.s32 3, %v473
        %v475 = vrot.slane %v450, %v474
        %v476 = vmul.f32 %v475, %v471
        %v477 = vadd.f32 %v470, %v476
        %v478 = vmul.f32 %v379, %v362
        %v479 = vld [vmem:[%s326 + $0x30] sm:$0xf]
        %v480 = vlaneseq
        %v481 = vshrl.u32 %v480, 7
        %v482 = vsub.s32 0, %v481
        %v483 = vrot.slane %v478, %v482
        %v484 = vmul.f32 %v483, %v479
        %v485 = vadd.f32 %v477, %v484
        %v486 = vld [vmem:[%s326 + $0x34] sm:$0xf]
        %v487 = vlaneseq
        %v488 = vshrl.u32 %v487, 7
        %v489 = vsub.s32 1, %v488
        %v490 = vrot.slane %v478, %v489
        %v491 = vmul.f32 %v490, %v486
        %v492 = vadd.f32 %v485, %v491
        %v493 = vld [vmem:[%s326 + $0x38] sm:$0xf]
        %v494 = vlaneseq
        %v495 = vshrl.u32 %v494, 7
        %v496 = vsub.s32 2, %v495
        %v497 = vrot.slane %v478, %v496
        %v498 = vmul.f32 %v497, %v493
        %v499 = vadd.f32 %v492, %v498
        %v500 = vld [vmem:[%s326 + $0x3c] sm:$0xf]
        %v501 = vlaneseq
        %v502 = vshrl.u32 %v501, 7
        %v503 = vsub.s32 3, %v502
        %v504 = vrot.slane %v478, %v503
        %v505 = vmul.f32 %v504, %v500
        %v506 = vadd.f32 %v499, %v505
        %v507 = vmul.f32 %v383, %v377
        %v508 = vmul.f32 %v384, %v372
        %v509 = vsub.f32 %v507, %v508
        %v510 = vmul.f32 %v509, 0.70710677
        %v511 = vld [vmem:[%s326 + $0x40] sm:$0xf]
        %v512 = vlaneseq
        %v513 = vshrl.u32 %v512, 7
        %v514 = vsub.s32 0, %v513
        %v515 = vrot.slane %v510, %v514
        %v516 = vmul.f32 %v515, %v511
        %v517 = vadd.f32 %v506, %v516
        %v518 = vld [vmem:[%s326 + $0x44] sm:$0xf]
        %v519 = vlaneseq
        %v520 = vshrl.u32 %v519, 7
        %v521 = vsub.s32 1, %v520
        %v522 = vrot.slane %v510, %v521
        %v523 = vmul.f32 %v522, %v518
        %v524 = vadd.f32 %v517, %v523
        %v525 = vld [vmem:[%s326 + $0x48] sm:$0xf]
        %v526 = vlaneseq
        %v527 = vshrl.u32 %v526, 7
        %v528 = vsub.s32 2, %v527
        %v529 = vrot.slane %v510, %v528
        %v530 = vmul.f32 %v529, %v525
        %v531 = vadd.f32 %v524, %v530
        %v532 = vld [vmem:[%s326 + $0x4c] sm:$0xf]
        %v533 = vlaneseq
        %v534 = vshrl.u32 %v533, 7
        %v535 = vsub.s32 3, %v534
        %v536 = vrot.slane %v510, %v535
        %v537 = vmul.f32 %v536, %v532
        %v538 = vadd.f32 %v531, %v537
        %v539 = vmul.f32 %v538, 0.28867513
        %540 = vst [vmem:[%s353 + $0x4] sm:$0xf] %v539
        %v541 = vmul.f32 %v378, %v372
        %v542 = vld [vmem:[%s326 + $0x20] sm:$0xf]
        %v543 = vlaneseq
        %v544 = vshrl.u32 %v543, 7
        %v545 = vsub.s32 0, %v544
        %v546 = vrot.slane %v541, %v545
        %v547 = vmul.f32 %v546, %v542
        %v548 = vld [vmem:[%s326 + $0x24] sm:$0xf]
        %v549 = vlaneseq
        %v550 = vshrl.u32 %v549, 7
        %v551 = vsub.s32 1, %v550
        %v552 = vrot.slane %v541, %v551
        %v553 = vmul.f32 %v552, %v548
        %v554 = vadd.f32 %v547, %v553
        %v555 = vld [vmem:[%s326 + $0x28] sm:$0xf]
        %v556 = vlaneseq
        %v557 = vshrl.u32 %v556, 7
        %v558 = vsub.s32 2, %v557
        %v559 = vrot.slane %v541, %v558
        %v560 = vmul.f32 %v559, %v555
        %v561 = vadd.f32 %v554, %v560
        %v562 = vld [vmem:[%s326 + $0x2c] sm:$0xf]
        %v563 = vlaneseq
        %v564 = vshrl.u32 %v563, 7
        %v565 = vsub.s32 3, %v564
        %v566 = vrot.slane %v541, %v565
        %v567 = vmul.f32 %v566, %v562
        %v568 = vadd.f32 %v561, %v567
        %v569 = vmul.f32 %v380, %v362
        %v570 = vld [vmem:[%s326 + $0x30] sm:$0xf]
        %v571 = vlaneseq
        %v572 = vshrl.u32 %v571, 7
        %v573 = vsub.s32 0, %v572
        %v574 = vrot.slane %v569, %v573
        %v575 = vmul.f32 %v574, %v570
        %v576 = vadd.f32 %v568, %v575
        %v577 = vld [vmem:[%s326 + $0x34] sm:$0xf]
        %v578 = vlaneseq
        %v579 = vshrl.u32 %v578, 7
        %v580 = vsub.s32 1, %v579
        %v581 = vrot.slane %v569, %v580
        %v582 = vmul.f32 %v581, %v577
        %v583 = vadd.f32 %v576, %v582
        %v584 = vld [vmem:[%s326 + $0x38] sm:$0xf]
        %v585 = vlaneseq
        %v586 = vshrl.u32 %v585, 7
        %v587 = vsub.s32 2, %v586
        %v588 = vrot.slane %v569, %v587
        %v589 = vmul.f32 %v588, %v584
        %v590 = vadd.f32 %v583, %v589
        %v591 = vld [vmem:[%s326 + $0x3c] sm:$0xf]
        %v592 = vlaneseq
        %v593 = vshrl.u32 %v592, 7
        %v594 = vsub.s32 3, %v593
        %v595 = vrot.slane %v569, %v594
        %v596 = vmul.f32 %v595, %v591
        %v597 = vadd.f32 %v590, %v596
        %v598 = vmul.f32 %v384, %v367
        %v599 = vmul.f32 %v382, %v377
        %v600 = vsub.f32 %v598, %v599
        %v601 = vmul.f32 %v600, 0.70710677
        %v602 = vld [vmem:[%s326 + $0x40] sm:$0xf]
        %v603 = vlaneseq
        %v604 = vshrl.u32 %v603, 7
        %v605 = vsub.s32 0, %v604
        %v606 = vrot.slane %v601, %v605
        %v607 = vmul.f32 %v606, %v602
        %v608 = vadd.f32 %v597, %v607
        %v609 = vld [vmem:[%s326 + $0x44] sm:$0xf]
        %v610 = vlaneseq
        %v611 = vshrl.u32 %v610, 7
        %v612 = vsub.s32 1, %v611
        %v613 = vrot.slane %v601, %v612
        %v614 = vmul.f32 %v613, %v609
        %v615 = vadd.f32 %v608, %v614
        %v616 = vld [vmem:[%s326 + $0x48] sm:$0xf]
        %v617 = vlaneseq
        %v618 = vshrl.u32 %v617, 7
        %v619 = vsub.s32 2, %v618
        %v620 = vrot.slane %v601, %v619
        %v621 = vmul.f32 %v620, %v616
        %v622 = vadd.f32 %v615, %v621
        %v623 = vld [vmem:[%s326 + $0x4c] sm:$0xf]
        %v624 = vlaneseq
        %v625 = vshrl.u32 %v624, 7
        %v626 = vsub.s32 3, %v625
        %v627 = vrot.slane %v601, %v626
        %v628 = vmul.f32 %v627, %v623
        %v629 = vadd.f32 %v622, %v628
        %v630 = vmul.f32 %v629, 0.28867513
        %631 = vst [vmem:[%s353 + $0x8] sm:$0xf] %v630
        %v632 = vmul.f32 %v378, %v377
        %v633 = vld [vmem:[%s326 + $0x20] sm:$0xf]
        %v634 = vlaneseq
        %v635 = vshrl.u32 %v634, 7
        %v636 = vsub.s32 0, %v635
        %v637 = vrot.slane %v632, %v636
        %v638 = vmul.f32 %v637, %v633
        %v639 = vld [vmem:[%s326 + $0x24] sm:$0xf]
        %v640 = vlaneseq
        %v641 = vshrl.u32 %v640, 7
        %v642 = vsub.s32 1, %v641
        %v643 = vrot.slane %v632, %v642
        %v644 = vmul.f32 %v643, %v639
        %v645 = vadd.f32 %v638, %v644
        %v646 = vld [vmem:[%s326 + $0x28] sm:$0xf]
        %v647 = vlaneseq
        %v648 = vshrl.u32 %v647, 7
        %v649 = vsub.s32 2, %v648
        %v650 = vrot.slane %v632, %v649
        %v651 = vmul.f32 %v650, %v646
        %v652 = vadd.f32 %v645, %v651
        %v653 = vld [vmem:[%s326 + $0x2c] sm:$0xf]
        %v654 = vlaneseq
        %v655 = vshrl.u32 %v654, 7
        %v656 = vsub.s32 3, %v655
        %v657 = vrot.slane %v632, %v656
        %v658 = vmul.f32 %v657, %v653
        %v659 = vadd.f32 %v652, %v658
        %v660 = vmul.f32 %v381, %v362
        %v661 = vld [vmem:[%s326 + $0x30] sm:$0xf]
        %v662 = vlaneseq
        %v663 = vshrl.u32 %v662, 7
        %v664 = vsub.s32 0, %v663
        %v665 = vrot.slane %v660, %v664
        %v666 = vmul.f32 %v665, %v661
        %v667 = vadd.f32 %v659, %v666
        %v668 = vld [vmem:[%s326 + $0x34] sm:$0xf]
        %v669 = vlaneseq
        %v670 = vshrl.u32 %v669, 7
        %v671 = vsub.s32 1, %v670
        %v672 = vrot.slane %v660, %v671
        %v673 = vmul.f32 %v672, %v668
        %v674 = vadd.f32 %v667, %v673
        %v675 = vld [vmem:[%s326 + $0x38] sm:$0xf]
        %v676 = vlaneseq
        %v677 = vshrl.u32 %v676, 7
        %v678 = vsub.s32 2, %v677
        %v679 = vrot.slane %v660, %v678
        %v680 = vmul.f32 %v679, %v675
        %v681 = vadd.f32 %v674, %v680
        %v682 = vld [vmem:[%s326 + $0x3c] sm:$0xf]
        %v683 = vlaneseq
        %v684 = vshrl.u32 %v683, 7
        %v685 = vsub.s32 3, %v684
        %v686 = vrot.slane %v660, %v685
        %v687 = vmul.f32 %v686, %v682
        %v688 = vadd.f32 %v681, %v687
        %v689 = vmul.f32 %v382, %v372
        %v690 = vmul.f32 %v383, %v367
        %v691 = vsub.f32 %v689, %v690
        %v692 = vmul.f32 %v691, 0.70710677
        %v693 = vld [vmem:[%s326 + $0x40] sm:$0xf]
        %v694 = vlaneseq
        %v695 = vshrl.u32 %v694, 7
        %v696 = vsub.s32 0, %v695
        %v697 = vrot.slane %v692, %v696
        %v698 = vmul.f32 %v697, %v693
        %v699 = vadd.f32 %v688, %v698
        %v700 = vld [vmem:[%s326 + $0x44] sm:$0xf]
        %v701 = vlaneseq
        %v702 = vshrl.u32 %v701, 7
        %v703 = vsub.s32 1, %v702
        %v704 = vrot.slane %v692, %v703
        %v705 = vmul.f32 %v704, %v700
        %v706 = vadd.f32 %v699, %v705
        %v707 = vld [vmem:[%s326 + $0x48] sm:$0xf]
        %v708 = vlaneseq
        %v709 = vshrl.u32 %v708, 7
        %v710 = vsub.s32 2, %v709
        %v711 = vrot.slane %v692, %v710
        %v712 = vmul.f32 %v711, %v707
        %v713 = vadd.f32 %v706, %v712
        %v714 = vld [vmem:[%s326 + $0x4c] sm:$0xf]
        %v715 = vlaneseq
        %v716 = vshrl.u32 %v715, 7
        %v717 = vsub.s32 3, %v716
        %v718 = vrot.slane %v692, %v717
        %v719 = vmul.f32 %v718, %v714
        %v720 = vadd.f32 %v713, %v719
        %v721 = vmul.f32 %v720, 0.28867513
        %722 = vst [vmem:[%s353 + $0xc] sm:$0xf] %v721
        %v723 = vmul.f32 %v380, %v377
        %v724 = vmul.f32 %v381, %v372
        %v725 = vsub.f32 %v723, %v724
        %v726 = vmul.f32 %v725, 0.70710677
        %v727 = vld [vmem:[%s326 + $0x50] sm:$0xf]
        %v728 = vlaneseq
        %v729 = vshrl.u32 %v728, 7
        %v730 = vsub.s32 0, %v729
        %v731 = vrot.slane %v726, %v730
        %v732 = vmul.f32 %v731, %v727
        %v733 = vld [vmem:[%s326 + $0x54] sm:$0xf]
        %v734 = vlaneseq
        %v735 = vshrl.u32 %v734, 7
        %v736 = vsub.s32 1, %v735
        %v737 = vrot.slane %v726, %v736
        %v738 = vmul.f32 %v737, %v733
        %v739 = vadd.f32 %v732, %v738
        %v740 = vld [vmem:[%s326 + $0x58] sm:$0xf]
        %v741 = vlaneseq
        %v742 = vshrl.u32 %v741, 7
        %v743 = vsub.s32 2, %v742
        %v744 = vrot.slane %v726, %v743
        %v745 = vmul.f32 %v744, %v740
        %v746 = vadd.f32 %v739, %v745
        %v747 = vld [vmem:[%s326 + $0x5c] sm:$0xf]
        %v748 = vlaneseq
        %v749 = vshrl.u32 %v748, 7
        %v750 = vsub.s32 3, %v749
        %v751 = vrot.slane %v726, %v750
        %v752 = vmul.f32 %v751, %v747
        %v753 = vadd.f32 %v746, %v752
        %v754 = vmul.f32 %v382, %v362
        %v755 = vld [vmem:[%s326 + $0x60] sm:$0xf]
        %v756 = vlaneseq
        %v757 = vshrl.u32 %v756, 7
        %v758 = vsub.s32 0, %v757
        %v759 = vrot.slane %v754, %v758
        %v760 = vmul.f32 %v759, %v755
        %v761 = vadd.f32 %v753, %v760
        %v762 = vld [vmem:[%s326 + $0x64] sm:$0xf]
        %v763 = vlaneseq
        %v764 = vshrl.u32 %v763, 7
        %v765 = vsub.s32 1, %v764
        %v766 = vrot.slane %v754, %v765
        %v767 = vmul.f32 %v766, %v762
        %v768 = vadd.f32 %v761, %v767
        %v769 = vld [vmem:[%s326 + $0x68] sm:$0xf]
        %v770 = vlaneseq
        %v771 = vshrl.u32 %v770, 7
        %v772 = vsub.s32 2, %v771
        %v773 = vrot.slane %v754, %v772
        %v774 = vmul.f32 %v773, %v769
        %v775 = vadd.f32 %v768, %v774
        %v776 = vld [vmem:[%s326 + $0x6c] sm:$0xf]
        %v777 = vlaneseq
        %v778 = vshrl.u32 %v777, 7
        %v779 = vsub.s32 3, %v778
        %v780 = vrot.slane %v754, %v779
        %v781 = vmul.f32 %v780, %v776
        %v782 = vadd.f32 %v775, %v781
        %v783 = vmul.f32 %v385, %v367
        %v784 = vld [vmem:[%s326 + $0x70] sm:$0xf]
        %v785 = vlaneseq
        %v786 = vshrl.u32 %v785, 7
        %v787 = vsub.s32 0, %v786
        %v788 = vrot.slane %v783, %v787
        %v789 = vmul.f32 %v788, %v784
        %v790 = vadd.f32 %v782, %v789
        %v791 = vld [vmem:[%s326 + $0x74] sm:$0xf]
        %v792 = vlaneseq
        %v793 = vshrl.u32 %v792, 7
        %v794 = vsub.s32 1, %v793
        %v795 = vrot.slane %v783, %v794
        %v796 = vmul.f32 %v795, %v791
        %v797 = vadd.f32 %v790, %v796
        %v798 = vld [vmem:[%s326 + $0x78] sm:$0xf]
        %v799 = vlaneseq
        %v800 = vshrl.u32 %v799, 7
        %v801 = vsub.s32 2, %v800
        %v802 = vrot.slane %v783, %v801
        %v803 = vmul.f32 %v802, %v798
        %v804 = vadd.f32 %v797, %v803
        %v805 = vld [vmem:[%s326 + $0x7c] sm:$0xf]
        %v806 = vlaneseq
        %v807 = vshrl.u32 %v806, 7
        %v808 = vsub.s32 3, %v807
        %v809 = vrot.slane %v783, %v808
        %v810 = vmul.f32 %v809, %v805
        %v811 = vadd.f32 %v804, %v810
        %v812 = vmul.f32 %v811, 0.28867513
        %813 = vst [vmem:[%s353 + $0x10] sm:$0xf] %v812
        %v814 = vmul.f32 %v381, %v367
        %v815 = vmul.f32 %v379, %v377
        %v816 = vsub.f32 %v814, %v815
        %v817 = vmul.f32 %v816, 0.70710677
        %v818 = vld [vmem:[%s326 + $0x50] sm:$0xf]
        %v819 = vlaneseq
        %v820 = vshrl.u32 %v819, 7
        %v821 = vsub.s32 0, %v820
        %v822 = vrot.slane %v817, %v821
        %v823 = vmul.f32 %v822, %v818
        %v824 = vld [vmem:[%s326 + $0x54] sm:$0xf]
        %v825 = vlaneseq
        %v826 = vshrl.u32 %v825, 7
        %v827 = vsub.s32 1, %v826
        %v828 = vrot.slane %v817, %v827
        %v829 = vmul.f32 %v828, %v824
        %v830 = vadd.f32 %v823, %v829
        %v831 = vld [vmem:[%s326 + $0x58] sm:$0xf]
        %v832 = vlaneseq
        %v833 = vshrl.u32 %v832, 7
        %v834 = vsub.s32 2, %v833
        %v835 = vrot.slane %v817, %v834
        %v836 = vmul.f32 %v835, %v831
        %v837 = vadd.f32 %v830, %v836
        %v838 = vld [vmem:[%s326 + $0x5c] sm:$0xf]
        %v839 = vlaneseq
        %v840 = vshrl.u32 %v839, 7
        %v841 = vsub.s32 3, %v840
        %v842 = vrot.slane %v817, %v841
        %v843 = vmul.f32 %v842, %v838
        %v844 = vadd.f32 %v837, %v843
        %v845 = vmul.f32 %v383, %v362
        %v846 = vld [vmem:[%s326 + $0x60] sm:$0xf]
        %v847 = vlaneseq
        %v848 = vshrl.u32 %v847, 7
        %v849 = vsub.s32 0, %v848
        %v850 = vrot.slane %v845, %v849
        %v851 = vmul.f32 %v850, %v846
        %v852 = vadd.f32 %v844, %v851
        %v853 = vld [vmem:[%s326 + $0x64] sm:$0xf]
        %v854 = vlaneseq
        %v855 = vshrl.u32 %v854, 7
        %v856 = vsub.s32 1, %v855
        %v857 = vrot.slane %v845, %v856
        %v858 = vmul.f32 %v857, %v853
        %v859 = vadd.f32 %v852, %v858
        %v860 = vld [vmem:[%s326 + $0x68] sm:$0xf]
        %v861 = vlaneseq
        %v862 = vshrl.u32 %v861, 7
        %v863 = vsub.s32 2, %v862
        %v864 = vrot.slane %v845, %v863
        %v865 = vmul.f32 %v864, %v860
        %v866 = vadd.f32 %v859, %v865
        %v867 = vld [vmem:[%s326 + $0x6c] sm:$0xf]
        %v868 = vlaneseq
        %v869 = vshrl.u32 %v868, 7
        %v870 = vsub.s32 3, %v869
        %v871 = vrot.slane %v845, %v870
        %v872 = vmul.f32 %v871, %v867
        %v873 = vadd.f32 %v866, %v872
        %v874 = vmul.f32 %v385, %v372
        %v875 = vld [vmem:[%s326 + $0x70] sm:$0xf]
        %v876 = vlaneseq
        %v877 = vshrl.u32 %v876, 7
        %v878 = vsub.s32 0, %v877
        %v879 = vrot.slane %v874, %v878
        %v880 = vmul.f32 %v879, %v875
        %v881 = vadd.f32 %v873, %v880
        %v882 = vld [vmem:[%s326 + $0x74] sm:$0xf]
        %v883 = vlaneseq
        %v884 = vshrl.u32 %v883, 7
        %v885 = vsub.s32 1, %v884
        %v886 = vrot.slane %v874, %v885
        %v887 = vmul.f32 %v886, %v882
        %v888 = vadd.f32 %v881, %v887
        %v889 = vld [vmem:[%s326 + $0x78] sm:$0xf]
        %v890 = vlaneseq
        %v891 = vshrl.u32 %v890, 7
        %v892 = vsub.s32 2, %v891
        %v893 = vrot.slane %v874, %v892
        %v894 = vmul.f32 %v893, %v889
        %v895 = vadd.f32 %v888, %v894
        %v896 = vld [vmem:[%s326 + $0x7c] sm:$0xf]
        %v897 = vlaneseq
        %v898 = vshrl.u32 %v897, 7
        %v899 = vsub.s32 3, %v898
        %v900 = vrot.slane %v874, %v899
        %v901 = vmul.f32 %v900, %v896
        %v902 = vadd.f32 %v895, %v901
        %v903 = vmul.f32 %v902, 0.28867513
        %904 = vst [vmem:[%s353 + $0x14] sm:$0xf] %v903
        %v905 = vmul.f32 %v379, %v372
        %v906 = vmul.f32 %v380, %v367
        %v907 = vsub.f32 %v905, %v906
        %v908 = vmul.f32 %v907, 0.70710677
        %v909 = vld [vmem:[%s326 + $0x50] sm:$0xf]
        %v910 = vlaneseq
        %v911 = vshrl.u32 %v910, 7
        %v912 = vsub.s32 0, %v911
        %v913 = vrot.slane %v908, %v912
        %v914 = vmul.f32 %v913, %v909
        %v915 = vld [vmem:[%s326 + $0x54] sm:$0xf]
        %v916 = vlaneseq
        %v917 = vshrl.u32 %v916, 7
        %v918 = vsub.s32 1, %v917
        %v919 = vrot.slane %v908, %v918
        %v920 = vmul.f32 %v919, %v915
        %v921 = vadd.f32 %v914, %v920
        %v922 = vld [vmem:[%s326 + $0x58] sm:$0xf]
        %v923 = vlaneseq
        %v924 = vshrl.u32 %v923, 7
        %v925 = vsub.s32 2, %v924
        %v926 = vrot.slane %v908, %v925
        %v927 = vmul.f32 %v926, %v922
        %v928 = vadd.f32 %v921, %v927
        %v929 = vld [vmem:[%s326 + $0x5c] sm:$0xf]
        %v930 = vlaneseq
        %v931 = vshrl.u32 %v930, 7
        %v932 = vsub.s32 3, %v931
        %v933 = vrot.slane %v908, %v932
        %v934 = vmul.f32 %v933, %v929
        %v935 = vadd.f32 %v928, %v934
        %v936 = vmul.f32 %v384, %v362
        %v937 = vld [vmem:[%s326 + $0x60] sm:$0xf]
        %v938 = vlaneseq
        %v939 = vshrl.u32 %v938, 7
        %v940 = vsub.s32 0, %v939
        %v941 = vrot.slane %v936, %v940
        %v942 = vmul.f32 %v941, %v937
        %v943 = vadd.f32 %v935, %v942
        %v944 = vld [vmem:[%s326 + $0x64] sm:$0xf]
        %v945 = vlaneseq
        %v946 = vshrl.u32 %v945, 7
        %v947 = vsub.s32 1, %v946
        %v948 = vrot.slane %v936, %v947
        %v949 = vmul.f32 %v948, %v944
        %v950 = vadd.f32 %v943, %v949
        %v951 = vld [vmem:[%s326 + $0x68] sm:$0xf]
        %v952 = vlaneseq
        %v953 = vshrl.u32 %v952, 7
        %v954 = vsub.s32 2, %v953
        %v955 = vrot.slane %v936, %v954
        %v956 = vmul.f32 %v955, %v951
        %v957 = vadd.f32 %v950, %v956
        %v958 = vld [vmem:[%s326 + $0x6c] sm:$0xf]
        %v959 = vlaneseq
        %v960 = vshrl.u32 %v959, 7
        %v961 = vsub.s32 3, %v960
        %v962 = vrot.slane %v936, %v961
        %v963 = vmul.f32 %v962, %v958
        %v964 = vadd.f32 %v957, %v963
        %v965 = vmul.f32 %v385, %v377
        %v966 = vld [vmem:[%s326 + $0x70] sm:$0xf]
        %v967 = vlaneseq
        %v968 = vshrl.u32 %v967, 7
        %v969 = vsub.s32 0, %v968
        %v970 = vrot.slane %v965, %v969
        %v971 = vmul.f32 %v970, %v966
        %v972 = vadd.f32 %v964, %v971
        %v973 = vld [vmem:[%s326 + $0x74] sm:$0xf]
        %v974 = vlaneseq
        %v975 = vshrl.u32 %v974, 7
        %v976 = vsub.s32 1, %v975
        %v977 = vrot.slane %v965, %v976
        %v978 = vmul.f32 %v977, %v973
        %v979 = vadd.f32 %v972, %v978
        %v980 = vld [vmem:[%s326 + $0x78] sm:$0xf]
        %v981 = vlaneseq
        %v982 = vshrl.u32 %v981, 7
        %v983 = vsub.s32 2, %v982
        %v984 = vrot.slane %v965, %v983
        %v985 = vmul.f32 %v984, %v980
        %v986 = vadd.f32 %v979, %v985
        %v987 = vld [vmem:[%s326 + $0x7c] sm:$0xf]
        %v988 = vlaneseq
        %v989 = vshrl.u32 %v988, 7
        %v990 = vsub.s32 3, %v989
        %v991 = vrot.slane %v965, %v990
        %v992 = vmul.f32 %v991, %v987
        %v993 = vadd.f32 %v986, %v992
        %v994 = vmul.f32 %v993, 0.28867513
        %995 = vst [vmem:[%s353 + $0x18] sm:$0xf] %v994
        %v996 = vmul.f32 %v382, %v367
        %v997 = vmul.f32 %v383, %v372
        %v998 = vadd.f32 %v996, %v997
        %v999 = vmul.f32 %v384, %v377
        %v1000 = vadd.f32 %v998, %v999
        %v1001 = vmul.f32 %v1000, 0.57735026
        %v1002 = vld [vmem:[%s326 + $0x80] sm:$0xf]
        %v1003 = vlaneseq
        %v1004 = vshrl.u32 %v1003, 7
        %v1005 = vsub.s32 0, %v1004
        %v1006 = vrot.slane %v1001, %v1005
        %v1007 = vmul.f32 %v1006, %v1002
        %v1008 = vld [vmem:[%s326 + $0x84] sm:$0xf]
        %v1009 = vlaneseq
        %v1010 = vshrl.u32 %v1009, 7
        %v1011 = vsub.s32 1, %v1010
        %v1012 = vrot.slane %v1001, %v1011
        %v1013 = vmul.f32 %v1012, %v1008
        %v1014 = vadd.f32 %v1007, %v1013
        %v1015 = vld [vmem:[%s326 + $0x88] sm:$0xf]
        %v1016 = vlaneseq
        %v1017 = vshrl.u32 %v1016, 7
        %v1018 = vsub.s32 2, %v1017
        %v1019 = vrot.slane %v1001, %v1018
        %v1020 = vmul.f32 %v1019, %v1015
        %v1021 = vadd.f32 %v1014, %v1020
        %v1022 = vld [vmem:[%s326 + $0x8c] sm:$0xf]
        %v1023 = vlaneseq
        %v1024 = vshrl.u32 %v1023, 7
        %v1025 = vsub.s32 3, %v1024
        %v1026 = vrot.slane %v1001, %v1025
        %v1027 = vmul.f32 %v1026, %v1022
        %v1028 = vadd.f32 %v1021, %v1027
        %v1029 = vmul.f32 %v385, %v362
        %v1030 = vld [vmem:[%s326 + $0x90] sm:$0xf]
        %v1031 = vlaneseq
        %v1032 = vshrl.u32 %v1031, 7
        %v1033 = vsub.s32 0, %v1032
        %v1034 = vrot.slane %v1029, %v1033
        %v1035 = vmul.f32 %v1034, %v1030
        %v1036 = vadd.f32 %v1028, %v1035
        %v1037 = vld [vmem:[%s326 + $0x94] sm:$0xf]
        %v1038 = vlaneseq
        %v1039 = vshrl.u32 %v1038, 7
        %v1040 = vsub.s32 1, %v1039
        %v1041 = vrot.slane %v1029, %v1040
        %v1042 = vmul.f32 %v1041, %v1037
        %v1043 = vadd.f32 %v1036, %v1042
        %v1044 = vld [vmem:[%s326 + $0x98] sm:$0xf]
        %v1045 = vlaneseq
        %v1046 = vshrl.u32 %v1045, 7
        %v1047 = vsub.s32 2, %v1046
        %v1048 = vrot.slane %v1029, %v1047
        %v1049 = vmul.f32 %v1048, %v1044
        %v1050 = vadd.f32 %v1043, %v1049
        %v1051 = vld [vmem:[%s326 + $0x9c] sm:$0xf]
        %v1052 = vlaneseq
        %v1053 = vshrl.u32 %v1052, 7
        %v1054 = vsub.s32 3, %v1053
        %v1055 = vrot.slane %v1029, %v1054
        %v1056 = vmul.f32 %v1055, %v1051
        %v1057 = vadd.f32 %v1050, %v1056
        %v1058 = vmul.f32 %v1057, 0.35355338
        %1059 = vst [vmem:[%s353 + $0x1c] sm:$0xf] %v1058
        %s1060 = sand.u32 %s100, 1
        %s1061 = sand.u32 %s100, 1
        %s1062 = smul.addr %s1061, 32
        %s1063 = scalar_lea.vmem [#allocation4], %s1062
        // Predicated region
        $region109: #{faster_tensor_product.1} parent=99 // pred_check
          %p1064 = pneg %p110
        $region110: #{faster_tensor_product.1} parent=99 // pred_check_branch
          %1066 = sbr.rel (%p1064) target = $region112
        $region111: #{faster_tensor_product.1} parent=99 // pred_region
          %s1067 = smul.addr %s14, 8
          %s1068 = scalar_lea.vmem %s3, %s1067
          // Predicated region
          $region113: #{faster_tensor_product.1} parent=111 // pred_check
            _
          $region114: #{faster_tensor_product.1} parent=111 // pred_check_branch
            %1070 = sbr.rel (0) target = $region116
          $region115: #{faster_tensor_product.1} parent=111 // pred_region
            // Predicated region
            $region117: #{faster_tensor_product.1} parent=115 // pred_check
              _
            $region118: #{faster_tensor_product.1} parent=115 // pred_check_branch
              %1072 = sbr.rel (0) target = $region120
            $region119: #{faster_tensor_product.1} parent=115 // pred_region
              // Predicated region
              $region132: #{faster_tensor_product.1} parent=119 // pred_check
                _
              $region133: #{faster_tensor_product.1} parent=119 // pred_check_branch
                %1093 = sbr.rel (0) target = $region135
              $region134: #{faster_tensor_product.1} parent=119 // pred_region
                loop: start=0, step=1, limit=1
                $region136: #{faster_tensor_product.1} parent=134 // loop_pre_header
                  _
                $region137: #{faster_tensor_product.1} parent=134 // loop_header
                  %s1095 = sphi 0, %s1099
                  %p1096 = scmp.ge.s32.totalorder %s1095, 1
                  %s1100 = sphi %s1063, %s1063
                  %s1101 = sphi %s1068, %s1068
                $region138: #{faster_tensor_product.1} parent=134 // loop_header_branch
                  %1098 = sbr.rel (%p1096) target = $region142
                $region139: #{faster_tensor_product.1} parent=134 // loop_body
                  %v1102 = vld [vmem:[%s1100] sm:$0xff]
                  %1103 = vst [vmem:[%s1101] sm:$0xff] %v1102
                  %v1104 = vld [vmem:[%s1100 + $0x8] sm:$0xff]
                  %1105 = vst [vmem:[%s1101 + $0x18] sm:$0xff] %v1104
                  %v1106 = vld [vmem:[%s1100 + $0x10] sm:$0xff]
                  %1107 = vst [vmem:[%s1101 + $0x30] sm:$0xff] %v1106
                  %v1108 = vld [vmem:[%s1100 + $0x18] sm:$0xff]
                  %1109 = vst [vmem:[%s1101 + $0x48] sm:$0xff] %v1108
                $region140: #{faster_tensor_product.1} parent=134 // loop_footer
                  %s1099 = sadd.s32 1, %s1095
                $region141: #{faster_tensor_product.1} parent=134 // loop_footer_branch
                  %1094 = sbr.rel target = $region137
                $region142: #{faster_tensor_product.1} parent=134 // loop_exit
                  _
              $region135: #{faster_tensor_product.1} parent=119 // pred_fallthru
                _
              // Predicated region
              $region143: #{faster_tensor_product.1} parent=119 // pred_check
                _
              $region144: #{faster_tensor_product.1} parent=119 // pred_check_branch
                %1111 = sbr.rel target = $region146
              $region145: #{faster_tensor_product.1} parent=119 // pred_region
                _
              $region146: #{faster_tensor_product.1} parent=119 // pred_fallthru
                _
            $region120: #{faster_tensor_product.1} parent=115 // pred_fallthru
              _
            // Predicated region
            $region121: #{faster_tensor_product.1} parent=115 // pred_check
              _
            $region122: #{faster_tensor_product.1} parent=115 // pred_check_branch
              %1074 = sbr.rel target = $region124
            $region123: #{faster_tensor_product.1} parent=115 // pred_region
              loop: start=0, step=1, limit=1
              $region125: #{faster_tensor_product.1} parent=123 // loop_pre_header
                _
              $region126: #{faster_tensor_product.1} parent=123 // loop_header
                %s1077 = sphi 0, %s1081
                %p1078 = scmp.ge.s32.totalorder %s1077, 1
                %s1082 = sphi %s1063, %s1063
                %s1083 = sphi %s1068, %s1068
              $region127: #{faster_tensor_product.1} parent=123 // loop_header_branch
                %1080 = sbr.rel (%p1078) target = $region131
              $region128: #{faster_tensor_product.1} parent=123 // loop_body
                %v1084 = vld [vmem:[%s1082] sm:$0xff]
                %1085 = vst [vmem:[%s1083] sm:$0xff] %v1084
                %v1086 = vld [vmem:[%s1082 + $0x8] sm:$0xff]
                %1087 = vst [vmem:[%s1083 + $0x18] sm:$0xff] %v1086
                %v1088 = vld [vmem:[%s1082 + $0x10] sm:$0xff]
                %1089 = vst [vmem:[%s1083 + $0x30] sm:$0xff] %v1088
                %v1090 = vld [vmem:[%s1082 + $0x18] sm:$0xff]
                %1091 = vst [vmem:[%s1083 + $0x48] sm:$0xff] %v1090
              $region129: #{faster_tensor_product.1} parent=123 // loop_footer
                %s1081 = sadd.s32 1, %s1077
              $region130: #{faster_tensor_product.1} parent=123 // loop_footer_branch
                %1076 = sbr.rel target = $region126
              $region131: #{faster_tensor_product.1} parent=123 // loop_exit
                _
            $region124: #{faster_tensor_product.1} parent=115 // pred_fallthru
              _
          $region116: #{faster_tensor_product.1} parent=111 // pred_fallthru
            _
          %1112 = vnop
        $region112: #{faster_tensor_product.1} parent=99 // pred_fallthru
          _
      $region100: #{faster_tensor_product.1} parent=5 // pred_fallthru
        _
      %p1113 = scmp.le.s32.totalorder 2, %s9
      // Predicated region
      $region147: #{faster_tensor_product.1} parent=5 // pred_check
        %p1114 = pneg %p1113
      $region148: #{faster_tensor_product.1} parent=5 // pred_check_branch
        %1116 = sbr.rel (%p1114) target = $region150
      $region149: #{faster_tensor_product.1} parent=5 // pred_region
        %s1117 = ssub.s32 %s9, 2
        // Predicated region
        $region151: #{faster_tensor_product.1} parent=149 // pred_check
          %p1118 = pneg %p116
        $region152: #{faster_tensor_product.1} parent=149 // pred_check_branch
          %1120 = sbr.rel (%p1118) target = $region154
        $region153: #{faster_tensor_product.1} parent=149 // pred_region
          %s1121 = sand.u32 %s101, 1
          %s1122 = sand.u32 %s101, 1
          %s1123 = smul.addr %s1122, 32
          %s1124 = scalar_lea.vmem [#allocation4], %s1123
        $region154: #{faster_tensor_product.1} parent=149 // pred_fallthru
          _
      $region150: #{faster_tensor_product.1} parent=5 // pred_fallthru
        _
    $region6: #{faster_tensor_product.1} parent=1 // loop_footer
      %s13 = sadd.s32 1, %s9
    $region7: #{faster_tensor_product.1} parent=1 // loop_footer_branch
      %8 = sbr.rel target = $region3
    $region8: #{faster_tensor_product.1} parent=1 // loop_exit
      _

</llo_original>
